<compile_context>
chip_gen: v5e
topology: v5e:2x2
jax: 0.10.0
libtpu: 0.0.40
codegen_flags: <defaults>
</compile_context>

<pallas_src>
import functools

import jax
import jax.numpy as jnp
from jax.experimental import pallas as pl
from jax.experimental.pallas import tpu as pltpu

# ----------------------------- configuration --------------------------------
C_IN = 3                       # RGB input
C_ENC = 10                     # EncoderBaseline output channels
C_POSE = 16                    # pose decoder output channels
C_BEV = 4                      # bev decoder output channels
C_OUT = C_POSE + C_BEV         # fused pose|bev decoder output channels
KSIZE = 3                      # encoder conv kernel size
TARGET_LANE_TILE = 2048        # ~2K output pixels per grid step (review opt #1)


# ------------------------------ Pallas kernel --------------------------------
def _bevnet_kernel(x_cur_ref, x_halo_ref, w_enc_ref, b_enc_ref,
                   w_dec_ref, b_dec_ref, pose_ref, bev_ref, *, wp, tl):
    """One grid step: `tl` output pixels (flat index p = y*Wp + x) of one image.

    Channels-on-sublane / pixels-on-lane layout, bf16 operands, f32 accumulate:
      x_cur  : (1, C_IN, tl)        bf16  current lane tile
      x_halo : (1, C_IN, halo_len)  bf16  small halo window right after it
      w_enc  : (9, C_ENC, C_IN)     bf16  3x3 conv taps, tap t = kh*3 + kw
      b_enc  : (C_ENC, 1)           f32
      w_dec  : (C_OUT, C_ENC)       bf16  fused pose|bev 1x1 conv
      b_dec  : (C_OUT, 1)           f32
      pose   : (1, C_POSE, tl)      bf16  lane-dense store (tl % 128 == 0)
      bev    : (1, C_BEV,  tl)      bf16  lane-dense store
    """
    x_cur = x_cur_ref[0]                                   # (C_IN, tl)       bf16
    x_halo = x_halo_ref[0]                                 # (C_IN, halo_len) bf16
    # lane-axis concat of 128-aligned pieces: layout-preserving, no relayout
    halo = jnp.concatenate([x_cur, x_halo], axis=-1)       # (C_IN, tl+halo)  bf16

    # 3x3 'same' conv built in-kernel (no HBM im2col).  Tap (kh, kw) of output
    # pixel p reads flat pixel p + kh*Wp + kw of the zero-padded image.
    # bf16 x bf16 dots (MXU-native) with f32 accumulation.
    feat = jnp.zeros((C_ENC, tl), jnp.float32)
    for kh in range(KSIZE):
        for kw in range(KSIZE):
            shift = kh * wp + kw                           # static per tap
            xs = halo[:, shift:shift + tl]                 # (C_IN, tl) bf16
            feat = feat + jnp.dot(w_enc_ref[kh * KSIZE + kw], xs,
                                  preferred_element_type=jnp.float32)
    feat = jnp.maximum(feat + b_enc_ref[...], 0.0)         # bias + ReLU (f32)
    feat = feat.astype(jnp.bfloat16)                       # bf16 hand-off -> MXU

    # fused pose|bev decoder: one (20,10)x(10,tl) matmul, split on the store
    out = jnp.dot(w_dec_ref[...], feat, preferred_element_type=jnp.float32)
    out = out + b_dec_ref[...]
    pose_ref[0] = out[:C_POSE].astype(pose_ref.dtype)
    bev_ref[0] = out[C_POSE:].astype(bev_ref.dtype)


# ------------------------------ parameters -----------------------------------
def init_params(key):
    """Deterministic synthetic parameters (shapes implied by BEVNetBase.__init__
    with EncoderBaseline -> 10 channels, pose + bev branches only).
    Weights are stored in bf16 (MXU-native); biases stay f32."""
    k1, k2, k3, k4, k5 = jax.random.split(key, 5)
    fan_in = KSIZE * KSIZE * C_IN
    w_enc = (jax.random.normal(k1, (KSIZE * KSIZE, C_ENC, C_IN), jnp.float32)
             * (2.0 / fan_in) ** 0.5)
    w_pose = jax.random.normal(k2, (C_POSE, C_ENC), jnp.float32) * (1.0 / C_ENC) ** 0.5
    w_bev = jax.random.normal(k3, (C_BEV, C_ENC), jnp.float32) * (1.0 / C_ENC) ** 0.5
    return {
        # encoder 3x3 conv, tap-major: (kh*3+kw, C_out, C_in)
        "w_enc": w_enc.astype(jnp.bfloat16),
        "b_enc": 0.1 * jax.random.normal(k4, (C_ENC, 1), jnp.float32),
        # pose (16 ch) and bev (4 ch) 1x1 decoders fused into one weight / bias
        "w_dec": jnp.concatenate([w_pose, w_bev], axis=0).astype(jnp.bfloat16),
        "b_dec": 0.1 * jax.random.normal(k5, (C_OUT, 1), jnp.float32),
    }


# ------------------------------ forward wrapper -------------------------------
def bevnet_forward(params, x_nchw, fu, fv=None, h_cam=None, p_cam=None):
    """Forward pass.  x_nchw: (N, C_IN, H, W) float32 (PyTorch NCHW layout).
    Returns bf16 pose / bev maps (bf16 output is the dominant HBM lever)."""
    n, c, h, w = x_nchw.shape
    assert c == C_IN
    hp, wp = h + 2, w + 2                                   # 'same' zero padding

    # bf16 pixel stream, channels-on-sublane / flat padded-row-major pixels-on-lane
    xp = jnp.pad(x_nchw.astype(jnp.bfloat16), ((0, 0), (0, 0), (1, 1), (1, 1)))
    xp_flat = xp.reshape(n, C_IN, hp * wp)

    # halo window: smallest 128-multiple covering the 3x3 receptive-field reach
    halo_len = ((2 * wp + 2 + 127) // 128) * 128
    l_out = h * wp                                          # H rows x padded width

    # lane tile: multiple of halo_len (keeps the halo index_map integral and the
    # tile lane-dense), ~TARGET_LANE_TILE, never bigger than the problem needs.
    # NOTE (v7x): for single tiny images (n * num_tiles == 1) one TensorCore
    # idles; real BEV inputs give plenty of grid steps to shard.
    units_total = pl.cdiv(l_out, halo_len)
    units_per_tile = min(units_total, pl.cdiv(TARGET_LANE_TILE, halo_len))
    tl = units_per_tile * halo_len
    num_tiles = pl.cdiv(l_out, tl)
    l_out_pad = num_tiles * tl
    l_in_pad = l_out_pad + halo_len                         # halo past the last tile
    xp_flat = jnp.pad(xp_flat, ((0, 0), (0, 0), (0, l_in_pad - hp * wp)))

    kernel = functools.partial(_bevnet_kernel, wp=wp, tl=tl)

    pose_flat, bev_flat = pl.pallas_call(
        kernel,
        out_shape=(jax.ShapeDtypeStruct((n, C_POSE, l_out_pad), jnp.bfloat16),
                   jax.ShapeDtypeStruct((n, C_BEV, l_out_pad), jnp.bfloat16)),
        grid_spec=pltpu.PrefetchScalarGridSpec(
            num_scalar_prefetch=0,
            grid=(n, num_tiles),
            in_specs=[
                # current lane tile
                pl.BlockSpec((1, C_IN, tl), lambda b, j: (b, 0, j)),
                # small halo window immediately after it (element offset (j+1)*tl)
                pl.BlockSpec((1, C_IN, halo_len),
                             lambda b, j: (b, 0, (j + 1) * units_per_tile)),
                # resident weights / biases (constant index maps -> DMA'd once)
                pl.BlockSpec((KSIZE * KSIZE, C_ENC, C_IN), lambda b, j: (0, 0, 0)),
                pl.BlockSpec((C_ENC, 1), lambda b, j: (0, 0)),
                pl.BlockSpec((C_OUT, C_ENC), lambda b, j: (0, 0)),
                pl.BlockSpec((C_OUT, 1), lambda b, j: (0, 0)),
            ],
            out_specs=[
                pl.BlockSpec((1, C_POSE, tl), lambda b, j: (b, 0, j)),
                pl.BlockSpec((1, C_BEV, tl), lambda b, j: (b, 0, j)),
            ],
        ),
        compiler_params=pltpu.CompilerParams(
            dimension_semantics=("parallel", "parallel")),
    )(xp_flat, xp_flat, params["w_enc"], params["b_enc"],
      params["w_dec"], params["b_dec"])

    def _crop(o_flat, c_out):
        # flat (H*Wp) padded-pixel axis -> (H, W); the padded columns (x = W,
        # W+1) hold wrap-around garbage and MUST stay cropped.  Outputs are
        # bf16, so this single fused slice/reshape pass moves half the bytes
        # an f32 output would.
        return o_flat[:, :, :l_out].reshape(n, c_out, h, wp)[:, :, :, :w]

    # TODO(synk): BEVNetBase.forward raises NotImplementedError upstream; the
    # BEVTransform consuming (fu, fv, h_cam, p_cam) is undefined, so the camera
    # parameters are accepted but not used.
    return {"pose": _crop(pose_flat, C_POSE), "bev": _crop(bev_flat, C_BEV)}


# ------------------------- pure-JAX reference (check) -------------------------
def _reference_forward(params, x_nchw):
    """Pure-JAX reference mirroring the kernel's mixed-precision recipe
    (bf16 weights, bf16 feature hand-off, f32 accumulation)."""
    n, _, h, w = x_nchw.shape
    w_enc = params["w_enc"].astype(jnp.float32)             # (9, 10, 3)
    w_dec = params["w_dec"].astype(jnp.float32)             # (20, 10)
    xp = jnp.pad(x_nchw, ((0, 0), (0, 0), (1, 1), (1, 1)))
    feat = jnp.zeros((n, C_ENC, h, w), jnp.float32)
    for kh in range(KSIZE):
        for kw in range(KSIZE):
            patch = xp[:, :, kh:kh + h, kw:kw + w]           # (N, C_IN, H, W)
            feat = feat + jnp.einsum('oc,nchw->nohw',
                                     w_enc[kh * KSIZE + kw], patch)
    feat = jnp.maximum(feat + params["b_enc"].reshape(1, C_ENC, 1, 1), 0.0)
    feat = feat.astype(jnp.bfloat16).astype(jnp.float32)     # bf16 hand-off
    out = jnp.einsum('oc,nchw->nohw', w_dec, feat)
    out = out + params["b_dec"].reshape(1, C_OUT, 1, 1)
    return {"pose": out[:, :C_POSE], "bev": out[:, C_POSE:]}


# ----------------------------------- main -------------------------------------
if __name__ == "__main__":
    key = jax.random.PRNGKey(0)
    k_param, k_x = jax.random.split(key)

    params = init_params(k_param)

    N, H, W = 2, 16, 16
    x = jax.random.normal(k_x, (N, C_IN, H, W), jnp.float32)   # NCHW input
    fu = jnp.full((N,), 320.0, jnp.float32)                    # focal length u
    fv = jnp.full((N,), 320.0, jnp.float32)                    # focal length v
    h_cam = jnp.full((N,), 1.5, jnp.float32)                   # camera height
    p_cam = jnp.zeros((N,), jnp.float32)                       # camera pitch

    fwd = jax.jit(bevnet_forward)
    out = fwd(params, x, fu, fv, h_cam, p_cam)
    jax.block_until_ready(out)

    assert out["pose"].shape == (N, C_POSE, H, W)
    assert out["bev"].shape == (N, C_BEV, H, W)

    # numerical sanity check vs a pure-JAX reference on the bf16-rounded input
    x_q = x.astype(jnp.bfloat16).astype(jnp.float32)
    ref = _reference_forward(params, x_q)
    pose = out["pose"].astype(jnp.float32)
    bev = out["bev"].astype(jnp.float32)
    assert jnp.allclose(pose, ref["pose"], atol=3e-2, rtol=3e-2)
    assert jnp.allclose(bev, ref["bev"], atol=3e-2, rtol=3e-2)

    print("KERNEL_OK")
</pallas_src>

<mosaic_0001>
module attributes {stable_mosaic.version = 11 : i64} {
  func.func @_bevnet_kernel(%arg0: i32, %arg1: i32, %arg2: memref<1x3x384xbf16, #tpu.memory_space<vmem>>, %arg3: memref<1x3x128xbf16, #tpu.memory_space<vmem>>, %arg4: memref<9x10x3xbf16, #tpu.memory_space<vmem>>, %arg5: memref<10x1xf32, #tpu.memory_space<vmem>>, %arg6: memref<20x10xbf16, #tpu.memory_space<vmem>>, %arg7: memref<20x1xf32, #tpu.memory_space<vmem>>, %arg8: memref<1x16x384xbf16, #tpu.memory_space<vmem>>, %arg9: memref<1x4x384xbf16, #tpu.memory_space<vmem>>) attributes {dimension_semantics = [#tpu.dimension_semantics<parallel>, #tpu.dimension_semantics<parallel>], iteration_bounds = array<i64: 2, 1>, scalar_prefetch = 0 : i64, scratch_operands = 0 : i64, tpu.core_type = #tpu.core_type<tc>, window_params = [{transform_indices = @transform_0, window_bounds = array<i64: 1, 3, 384>}, {transform_indices = @transform_1, window_bounds = array<i64: 1, 3, 128>}, {pipeline_mode = #tpu.pipeline_mode<synchronous>, transform_indices = @transform_2, window_bounds = array<i64: 9, 10, 3>}, {pipeline_mode = #tpu.pipeline_mode<synchronous>, transform_indices = @transform_3, window_bounds = array<i64: 10, 1>}, {pipeline_mode = #tpu.pipeline_mode<synchronous>, transform_indices = @transform_4, window_bounds = array<i64: 20, 10>}, {pipeline_mode = #tpu.pipeline_mode<synchronous>, transform_indices = @transform_5, window_bounds = array<i64: 20, 1>}, {transform_indices = @transform_6, window_bounds = array<i64: 1, 16, 384>}, {transform_indices = @transform_7, window_bounds = array<i64: 1, 4, 384>}]} {
    %c0 = arith.constant 0 : index
    %c0_0 = arith.constant 0 : index
    %c0_1 = arith.constant 0 : index
    %0 = vector.load %arg2[%c0, %c0_0, %c0_1] : memref<1x3x384xbf16, #tpu.memory_space<vmem>>, vector<1x3x384xbf16>
    %1 = vector.shape_cast %0 : vector<1x3x384xbf16> to vector<3x384xbf16>
    %c0_2 = arith.constant 0 : index
    %c0_3 = arith.constant 0 : index
    %c0_4 = arith.constant 0 : index
    %2 = vector.load %arg3[%c0_2, %c0_3, %c0_4] : memref<1x3x128xbf16, #tpu.memory_space<vmem>>, vector<1x3x128xbf16>
    %3 = vector.shape_cast %2 : vector<1x3x128xbf16> to vector<3x128xbf16>
    %4 = tpu.concatenate %1, %3 in 1 : vector<3x384xbf16>, vector<3x128xbf16> -> vector<3x512xbf16>
    %cst = arith.constant 0.000000e+00 : f32
    %5 = vector.broadcast %cst : f32 to vector<10x384xf32>
    %6 = vector.extract_strided_slice %4 {offsets = [0, 0], sizes = [3, 384], strides = [1, 1]} : vector<3x512xbf16> to vector<3x384xbf16>
    %c0_5 = arith.constant 0 : index
    %c0_6 = arith.constant 0 : index
    %c0_7 = arith.constant 0 : index
    %7 = vector.load %arg4[%c0_5, %c0_6, %c0_7] : memref<9x10x3xbf16, #tpu.memory_space<vmem>>, vector<1x10x3xbf16>
    %8 = vector.shape_cast %7 : vector<1x10x3xbf16> to vector<10x3xbf16>
    %cst_8 = arith.constant dense<0.000000e+00> : vector<10x384xf32>
    %9 = tpu.matmul %8, %6, %cst_8 {dimension_numbers = #tpu.dot_dimension_numbers<[1], [0], [0], [1], [0, 0, 1, 1], [], []>} : vector<10x3xbf16>, vector<3x384xbf16>, vector<10x384xf32> -> vector<10x384xf32>
    %10 = arith.addf %5, %9 : vector<10x384xf32>
    %11 = vector.extract_strided_slice %4 {offsets = [0, 1], sizes = [3, 384], strides = [1, 1]} : vector<3x512xbf16> to vector<3x384xbf16>
    %c1 = arith.constant 1 : index
    %c0_9 = arith.constant 0 : index
    %c0_10 = arith.constant 0 : index
    %12 = vector.load %arg4[%c1, %c0_9, %c0_10] : memref<9x10x3xbf16, #tpu.memory_space<vmem>>, vector<1x10x3xbf16>
    %13 = vector.shape_cast %12 : vector<1x10x3xbf16> to vector<10x3xbf16>
    %cst_11 = arith.constant dense<0.000000e+00> : vector<10x384xf32>
    %14 = tpu.matmul %13, %11, %cst_11 {dimension_numbers = #tpu.dot_dimension_numbers<[1], [0], [0], [1], [0, 0, 1, 1], [], []>} : vector<10x3xbf16>, vector<3x384xbf16>, vector<10x384xf32> -> vector<10x384xf32>
    %15 = arith.addf %10, %14 : vector<10x384xf32>
    %16 = vector.extract_strided_slice %4 {offsets = [0, 2], sizes = [3, 384], strides = [1, 1]} : vector<3x512xbf16> to vector<3x384xbf16>
    %c2 = arith.constant 2 : index
    %c0_12 = arith.constant 0 : index
    %c0_13 = arith.constant 0 : index
    %17 = vector.load %arg4[%c2, %c0_12, %c0_13] : memref<9x10x3xbf16, #tpu.memory_space<vmem>>, vector<1x10x3xbf16>
    %18 = vector.shape_cast %17 : vector<1x10x3xbf16> to vector<10x3xbf16>
    %cst_14 = arith.constant dense<0.000000e+00> : vector<10x384xf32>
    %19 = tpu.matmul %18, %16, %cst_14 {dimension_numbers = #tpu.dot_dimension_numbers<[1], [0], [0], [1], [0, 0, 1, 1], [], []>} : vector<10x3xbf16>, vector<3x384xbf16>, vector<10x384xf32> -> vector<10x384xf32>
    %20 = arith.addf %15, %19 : vector<10x384xf32>
    %21 = vector.extract_strided_slice %4 {offsets = [0, 18], sizes = [3, 384], strides = [1, 1]} : vector<3x512xbf16> to vector<3x384xbf16>
    %c3 = arith.constant 3 : index
    %c0_15 = arith.constant 0 : index
    %c0_16 = arith.constant 0 : index
    %22 = vector.load %arg4[%c3, %c0_15, %c0_16] : memref<9x10x3xbf16, #tpu.memory_space<vmem>>, vector<1x10x3xbf16>
    %23 = vector.shape_cast %22 : vector<1x10x3xbf16> to vector<10x3xbf16>
    %cst_17 = arith.constant dense<0.000000e+00> : vector<10x384xf32>
    %24 = tpu.matmul %23, %21, %cst_17 {dimension_numbers = #tpu.dot_dimension_numbers<[1], [0], [0], [1], [0, 0, 1, 1], [], []>} : vector<10x3xbf16>, vector<3x384xbf16>, vector<10x384xf32> -> vector<10x384xf32>
    %25 = arith.addf %20, %24 : vector<10x384xf32>
    %26 = vector.extract_strided_slice %4 {offsets = [0, 19], sizes = [3, 384], strides = [1, 1]} : vector<3x512xbf16> to vector<3x384xbf16>
    %c4 = arith.constant 4 : index
    %c0_18 = arith.constant 0 : index
    %c0_19 = arith.constant 0 : index
    %27 = vector.load %arg4[%c4, %c0_18, %c0_19] : memref<9x10x3xbf16, #tpu.memory_space<vmem>>, vector<1x10x3xbf16>
    %28 = vector.shape_cast %27 : vector<1x10x3xbf16> to vector<10x3xbf16>
    %cst_20 = arith.constant dense<0.000000e+00> : vector<10x384xf32>
    %29 = tpu.matmul %28, %26, %cst_20 {dimension_numbers = #tpu.dot_dimension_numbers<[1], [0], [0], [1], [0, 0, 1, 1], [], []>} : vector<10x3xbf16>, vector<3x384xbf16>, vector<10x384xf32> -> vector<10x384xf32>
    %30 = arith.addf %25, %29 : vector<10x384xf32>
    %31 = vector.extract_strided_slice %4 {offsets = [0, 20], sizes = [3, 384], strides = [1, 1]} : vector<3x512xbf16> to vector<3x384xbf16>
    %c5 = arith.constant 5 : index
    %c0_21 = arith.constant 0 : index
    %c0_22 = arith.constant 0 : index
    %32 = vector.load %arg4[%c5, %c0_21, %c0_22] : memref<9x10x3xbf16, #tpu.memory_space<vmem>>, vector<1x10x3xbf16>
    %33 = vector.shape_cast %32 : vector<1x10x3xbf16> to vector<10x3xbf16>
    %cst_23 = arith.constant dense<0.000000e+00> : vector<10x384xf32>
    %34 = tpu.matmul %33, %31, %cst_23 {dimension_numbers = #tpu.dot_dimension_numbers<[1], [0], [0], [1], [0, 0, 1, 1], [], []>} : vector<10x3xbf16>, vector<3x384xbf16>, vector<10x384xf32> -> vector<10x384xf32>
    %35 = arith.addf %30, %34 : vector<10x384xf32>
    %36 = vector.extract_strided_slice %4 {offsets = [0, 36], sizes = [3, 384], strides = [1, 1]} : vector<3x512xbf16> to vector<3x384xbf16>
    %c6 = arith.constant 6 : index
    %c0_24 = arith.constant 0 : index
    %c0_25 = arith.constant 0 : index
    %37 = vector.load %arg4[%c6, %c0_24, %c0_25] : memref<9x10x3xbf16, #tpu.memory_space<vmem>>, vector<1x10x3xbf16>
    %38 = vector.shape_cast %37 : vector<1x10x3xbf16> to vector<10x3xbf16>
    %cst_26 = arith.constant dense<0.000000e+00> : vector<10x384xf32>
    %39 = tpu.matmul %38, %36, %cst_26 {dimension_numbers = #tpu.dot_dimension_numbers<[1], [0], [0], [1], [0, 0, 1, 1], [], []>} : vector<10x3xbf16>, vector<3x384xbf16>, vector<10x384xf32> -> vector<10x384xf32>
    %40 = arith.addf %35, %39 : vector<10x384xf32>
    %41 = vector.extract_strided_slice %4 {offsets = [0, 37], sizes = [3, 384], strides = [1, 1]} : vector<3x512xbf16> to vector<3x384xbf16>
    %c7 = arith.constant 7 : index
    %c0_27 = arith.constant 0 : index
    %c0_28 = arith.constant 0 : index
    %42 = vector.load %arg4[%c7, %c0_27, %c0_28] : memref<9x10x3xbf16, #tpu.memory_space<vmem>>, vector<1x10x3xbf16>
    %43 = vector.shape_cast %42 : vector<1x10x3xbf16> to vector<10x3xbf16>
    %cst_29 = arith.constant dense<0.000000e+00> : vector<10x384xf32>
    %44 = tpu.matmul %43, %41, %cst_29 {dimension_numbers = #tpu.dot_dimension_numbers<[1], [0], [0], [1], [0, 0, 1, 1], [], []>} : vector<10x3xbf16>, vector<3x384xbf16>, vector<10x384xf32> -> vector<10x384xf32>
    %45 = arith.addf %40, %44 : vector<10x384xf32>
    %46 = vector.extract_strided_slice %4 {offsets = [0, 38], sizes = [3, 384], strides = [1, 1]} : vector<3x512xbf16> to vector<3x384xbf16>
    %c8 = arith.constant 8 : index
    %c0_30 = arith.constant 0 : index
    %c0_31 = arith.constant 0 : index
    %47 = vector.load %arg4[%c8, %c0_30, %c0_31] : memref<9x10x3xbf16, #tpu.memory_space<vmem>>, vector<1x10x3xbf16>
    %48 = vector.shape_cast %47 : vector<1x10x3xbf16> to vector<10x3xbf16>
    %cst_32 = arith.constant dense<0.000000e+00> : vector<10x384xf32>
    %49 = tpu.matmul %48, %46, %cst_32 {dimension_numbers = #tpu.dot_dimension_numbers<[1], [0], [0], [1], [0, 0, 1, 1], [], []>} : vector<10x3xbf16>, vector<3x384xbf16>, vector<10x384xf32> -> vector<10x384xf32>
    %50 = arith.addf %45, %49 : vector<10x384xf32>
    %c0_33 = arith.constant 0 : index
    %c0_34 = arith.constant 0 : index
    %51 = vector.load %arg5[%c0_33, %c0_34] : memref<10x1xf32, #tpu.memory_space<vmem>>, vector<10x1xf32>
    %52 = vector.broadcast %51 : vector<10x1xf32> to vector<10x384xf32>
    %53 = arith.addf %50, %52 : vector<10x384xf32>
    %cst_35 = arith.constant 0.000000e+00 : f32
    %54 = vector.broadcast %cst_35 : f32 to vector<10x384xf32>
    %55 = arith.maximumf %53, %54 : vector<10x384xf32>
    %56 = arith.truncf %55 : vector<10x384xf32> to vector<10x384xbf16>
    %c0_36 = arith.constant 0 : index
    %c0_37 = arith.constant 0 : index
    %57 = vector.load %arg6[%c0_36, %c0_37] : memref<20x10xbf16, #tpu.memory_space<vmem>>, vector<20x10xbf16>
    %cst_38 = arith.constant dense<0.000000e+00> : vector<20x384xf32>
    %58 = tpu.matmul %57, %56, %cst_38 {dimension_numbers = #tpu.dot_dimension_numbers<[1], [0], [0], [1], [0, 0, 1, 1], [], []>} : vector<20x10xbf16>, vector<10x384xbf16>, vector<20x384xf32> -> vector<20x384xf32>
    %c0_39 = arith.constant 0 : index
    %c0_40 = arith.constant 0 : index
    %59 = vector.load %arg7[%c0_39, %c0_40] : memref<20x1xf32, #tpu.memory_space<vmem>>, vector<20x1xf32>
    %60 = vector.broadcast %59 : vector<20x1xf32> to vector<20x384xf32>
    %61 = arith.addf %58, %60 : vector<20x384xf32>
    %62 = vector.extract_strided_slice %61 {offsets = [0, 0], sizes = [16, 384], strides = [1, 1]} : vector<20x384xf32> to vector<16x384xf32>
    %63 = arith.truncf %62 : vector<16x384xf32> to vector<16x384xbf16>
    %c0_41 = arith.constant 0 : index
    %c0_42 = arith.constant 0 : index
    %c0_43 = arith.constant 0 : index
    %64 = vector.load %arg8[%c0_41, %c0_42, %c0_43] : memref<1x16x384xbf16, #tpu.memory_space<vmem>>, vector<1x16x384xbf16>
    %65 = vector.shape_cast %64 : vector<1x16x384xbf16> to vector<16x384xbf16>
    %66 = vector.shape_cast %63 : vector<16x384xbf16> to vector<1x16x384xbf16>
    tpu.vector_store %arg8[%c0_41, %c0_42, %c0_43], %66 {strides = array<i32>} : memref<1x16x384xbf16, #tpu.memory_space<vmem>>, vector<1x16x384xbf16>,
    %67 = vector.extract_strided_slice %61 {offsets = [16, 0], sizes = [4, 384], strides = [1, 1]} : vector<20x384xf32> to vector<4x384xf32>
    %68 = arith.truncf %67 : vector<4x384xf32> to vector<4x384xbf16>
    %c0_44 = arith.constant 0 : index
    %c0_45 = arith.constant 0 : index
    %c0_46 = arith.constant 0 : index
    %69 = vector.load %arg9[%c0_44, %c0_45, %c0_46] : memref<1x4x384xbf16, #tpu.memory_space<vmem>>, vector<1x4x384xbf16>
    %70 = vector.shape_cast %69 : vector<1x4x384xbf16> to vector<4x384xbf16>
    %71 = vector.shape_cast %68 : vector<4x384xbf16> to vector<1x4x384xbf16>
    tpu.vector_store %arg9[%c0_44, %c0_45, %c0_46], %71 {strides = array<i32>} : memref<1x4x384xbf16, #tpu.memory_space<vmem>>, vector<1x4x384xbf16>,
    return
  }
  func.func @transform_0(%arg0: i32, %arg1: i32) -> (i32, i32, i32) {
    %c0_i32 = arith.constant 0 : i32
    %c0_i32_0 = arith.constant 0 : i32
    return %arg0, %c0_i32, %arg1 : i32, i32, i32
  }
  func.func @transform_1(%arg0: i32, %arg1: i32) -> (i32, i32, i32) {
    %c1_i32 = arith.constant 1 : i32
    %0 = arith.addi %arg1, %c1_i32 : i32
    %c3_i32 = arith.constant 3 : i32
    %1 = arith.muli %0, %c3_i32 : i32
    %c0_i32 = arith.constant 0 : i32
    %c0_i32_0 = arith.constant 0 : i32
    return %arg0, %c0_i32, %1 : i32, i32, i32
  }
  func.func @transform_2(%arg0: i32, %arg1: i32) -> (i32, i32, i32) {
    %c0_i32 = arith.constant 0 : i32
    %c0_i32_0 = arith.constant 0 : i32
    %c0_i32_1 = arith.constant 0 : i32
    %c0_i32_2 = arith.constant 0 : i32
    return %c0_i32, %c0_i32_0, %c0_i32_1 : i32, i32, i32
  }
  func.func @transform_3(%arg0: i32, %arg1: i32) -> (i32, i32) {
    %c0_i32 = arith.constant 0 : i32
    %c0_i32_0 = arith.constant 0 : i32
    %c0_i32_1 = arith.constant 0 : i32
    return %c0_i32, %c0_i32_0 : i32, i32
  }
  func.func @transform_4(%arg0: i32, %arg1: i32) -> (i32, i32) {
    %c0_i32 = arith.constant 0 : i32
    %c0_i32_0 = arith.constant 0 : i32
    %c0_i32_1 = arith.constant 0 : i32
    return %c0_i32, %c0_i32_0 : i32, i32
  }
  func.func @transform_5(%arg0: i32, %arg1: i32) -> (i32, i32) {
    %c0_i32 = arith.constant 0 : i32
    %c0_i32_0 = arith.constant 0 : i32
    %c0_i32_1 = arith.constant 0 : i32
    return %c0_i32, %c0_i32_0 : i32, i32
  }
  func.func @transform_6(%arg0: i32, %arg1: i32) -> (i32, i32, i32) {
    %c0_i32 = arith.constant 0 : i32
    %c0_i32_0 = arith.constant 0 : i32
    return %arg0, %c0_i32, %arg1 : i32, i32, i32
  }
  func.func @transform_7(%arg0: i32, %arg1: i32) -> (i32, i32, i32) {
    %c0_i32 = arith.constant 0 : i32
    %c0_i32_0 = arith.constant 0 : i32
    return %arg0, %c0_i32, %arg1 : i32, i32, i32
  }
}

</mosaic_0001>

<llo_original>
// kernel: bevnet_forward.1
$region0: #{bevnet_forward.1}
  #allocation0 [shape = 'u32[]', space=smem, size = 0x4, offset = 0x4, fixed_abs, tag = 'smem constant byte address 0x4 - core index']
  #allocation1 [shape = 'u32[72,128]{1,0:T(1,128)}', space=vmem, size = 0x9000, scoped, tag = 'internal scratch']
  %s0 = inlined_call_operand.vmem [shape: bf16[2,3,512], index: 0, kind: input, shape index: {}, may-alias: {0,1}]
  %s1 = inlined_call_operand.vmem [shape: bf16[2,3,512], index: 1, kind: input, shape index: {}, may-alias: {0,1}]
  %s2 = inlined_call_operand.vmem [shape: bf16[9,10,3], index: 2, kind: input, shape index: {}]
  %s3 = inlined_call_operand.vmem [shape: f32[10,1], index: 3, kind: input, shape index: {}]
  %s4 = inlined_call_operand.vmem [shape: bf16[20,10], index: 4, kind: input, shape index: {}]
  %s5 = inlined_call_operand.vmem [shape: f32[20,1], index: 5, kind: input, shape index: {}]
  %s6 = inlined_call_operand.vmem [shape: bf16[2,16,384], index: 6, kind: output, shape index: {0}]
  %s7 = inlined_call_operand.vmem [shape: bf16[2,4,384], index: 7, kind: output, shape index: {1}]
  %8 = xla_tuple %s6, %s7
  %s9 = sld [smem:[#allocation0]]
  $region65: #{bevnet_forward.1} parent=0
    _
  %s11 = ssub.s32 1, %s9
  %s12 = scalar_select 0, %s11, %s9
  loop: start=0, step=1, limit=4
  $region2: #{bevnet_forward.1} parent=0 // loop_pre_header
    _
  $region3: #{bevnet_forward.1} parent=0 // loop_header
    %s14 = sphi 0, %s18
    %p15 = scmp.ge.s32.totalorder %s14, 4
    %s21 = sphi 0, %s33
    %s22 = sphi 0, %s29
    %s23 = sphi 0, %s21
    %s24 = sphi 0, %s22
    %s25 = sphi 0, %s23
    %s26 = sphi 0, %s24
    %s38 = sphi 0, %s40
    %s41 = sphi 0, %s38
    %s42 = sphi 0, %s41
    %s58 = sphi 0, %s42
    %s70 = sphi 0, %s72
    %s73 = sphi 0, %s70
    %s74 = sphi 0, %s73
    %s90 = sphi 0, %s74
    %s94 = sphi 0, %s94
    %s96 = sphi 0, %s94
    %s97 = sphi 0, %s96
    %s111 = sphi 0, %s97
    %s115 = sphi 0, %s115
    %s117 = sphi 0, %s115
    %s118 = sphi 0, %s117
    %s132 = sphi 0, %s118
    %s136 = sphi 0, %s136
    %s138 = sphi 0, %s136
    %s139 = sphi 0, %s138
    %s153 = sphi 0, %s139
    %s157 = sphi 0, %s157
    %s159 = sphi 0, %s157
    %s160 = sphi 0, %s159
    %s174 = sphi 0, %s160
    %s182 = sphi 0, %s184
    %s185 = sphi 0, %s182
    %s186 = sphi 0, %s185
    %s202 = sphi 0, %s186
    %s210 = sphi 0, %s212
    %s213 = sphi 0, %s210
    %s214 = sphi 0, %s213
    %s230 = sphi 0, %s214
  $region4: #{bevnet_forward.1} parent=0 // loop_header_branch
    %17 = sbr.rel (%p15) target = $region8
  $region5: #{bevnet_forward.1} parent=0 // loop_body
    %s19 = ssub.s32 %s14, 1
    %s20 = ssub.s32 %s14, 2
    %s27 = sadd.s32 1, %s22
    %p28 = scmp.ge.s32.totalorder %s27, 1
    %s29 = scalar_select %p28, 0, %s27
    %s30 = sadd.s32 1, %s21
    %s31 = scalar_select %p28, %s30, %s21
    %p32 = scmp.ge.s32.totalorder %s31, 2
    %s33 = scalar_select %p32, 0, %s31
    %s34 = ssub.s32 %s21, %s33
    %s35 = ssub.s32 %s22, %s29
    %s36 = sor.u32 %s34, %s35
    %p37 = scmp.eq.s32.totalorder %s36, 0
    %s39 = sadd.s32 %s38, 1
    %s40 = scalar_select %p37, %s38, %s39
    %p43 = pneg %p37
    %p44 = scmp.eq.s32.totalorder %s14, 1
    %p45 = por %p43, %p44
    %p46 = scmp.ne.s32.totalorder %s38, %s41
    %p47 = scmp.eq.s32.totalorder %s14, 0
    %p48 = por %p46, %p47
    %p49 = scmp.ne.s32.totalorder %s38, %s41
    %p50 = scmp.eq.s32.totalorder %s19, 1
    %p51 = por %p49, %p50
    %p52 = scmp.ne.s32.totalorder %s41, %s42
    %p53 = scmp.eq.s32.totalorder %s19, 0
    %p54 = por %p52, %p53
    %p55 = scmp.ne.s32.totalorder %s41, %s42
    %p56 = scmp.eq.s32.totalorder %s20, 1
    %p57 = por %p55, %p56
    %p59 = scmp.ne.s32.totalorder %s42, %s58
    %p60 = scmp.eq.s32.totalorder %s20, 0
    %p61 = por %p59, %p60
    %s62 = sadd.s32 %s22, 1
    %s63 = smul.u32 %s62, 3
    %s64 = sadd.s32 %s29, 1
    %s65 = smul.u32 %s64, 3
    %s66 = ssub.s32 %s21, %s33
    %s67 = ssub.s32 %s63, %s65
    %s68 = sor.u32 %s66, %s67
    %p69 = scmp.eq.s32.totalorder %s68, 0
    %s71 = sadd.s32 %s70, 1
    %s72 = scalar_select %p69, %s70, %s71
    %p75 = pneg %p69
    %p76 = scmp.eq.s32.totalorder %s14, 1
    %p77 = por %p75, %p76
    %p78 = scmp.ne.s32.totalorder %s70, %s73
    %p79 = scmp.eq.s32.totalorder %s14, 0
    %p80 = por %p78, %p79
    %p81 = scmp.ne.s32.totalorder %s70, %s73
    %p82 = scmp.eq.s32.totalorder %s19, 1
    %p83 = por %p81, %p82
    %p84 = scmp.ne.s32.totalorder %s73, %s74
    %p85 = scmp.eq.s32.totalorder %s19, 0
    %p86 = por %p84, %p85
    %p87 = scmp.ne.s32.totalorder %s73, %s74
    %p88 = scmp.eq.s32.totalorder %s20, 1
    %p89 = por %p87, %p88
    %p91 = scmp.ne.s32.totalorder %s74, %s90
    %p92 = scmp.eq.s32.totalorder %s20, 0
    %p93 = por %p91, %p92
    %s95 = sadd.s32 %s94, 1
    %p98 = scmp.eq.s32.totalorder %s14, 1
    %p99 = scmp.ne.s32.totalorder %s94, %s96
    %p100 = scmp.eq.s32.totalorder %s14, 0
    %p101 = por %p99, %p100
    %p102 = scmp.ne.s32.totalorder %s94, %s96
    %p103 = scmp.eq.s32.totalorder %s19, 1
    %p104 = por %p102, %p103
    %p105 = scmp.ne.s32.totalorder %s96, %s97
    %p106 = scmp.eq.s32.totalorder %s19, 0
    %p107 = por %p105, %p106
    %p108 = scmp.ne.s32.totalorder %s96, %s97
    %p109 = scmp.eq.s32.totalorder %s20, 1
    %p110 = por %p108, %p109
    %p112 = scmp.ne.s32.totalorder %s97, %s111
    %p113 = scmp.eq.s32.totalorder %s20, 0
    %p114 = por %p112, %p113
    %s116 = sadd.s32 %s115, 1
    %p119 = scmp.eq.s32.totalorder %s14, 1
    %p120 = scmp.ne.s32.totalorder %s115, %s117
    %p121 = scmp.eq.s32.totalorder %s14, 0
    %p122 = por %p120, %p121
    %p123 = scmp.ne.s32.totalorder %s115, %s117
    %p124 = scmp.eq.s32.totalorder %s19, 1
    %p125 = por %p123, %p124
    %p126 = scmp.ne.s32.totalorder %s117, %s118
    %p127 = scmp.eq.s32.totalorder %s19, 0
    %p128 = por %p126, %p127
    %p129 = scmp.ne.s32.totalorder %s117, %s118
    %p130 = scmp.eq.s32.totalorder %s20, 1
    %p131 = por %p129, %p130
    %p133 = scmp.ne.s32.totalorder %s118, %s132
    %p134 = scmp.eq.s32.totalorder %s20, 0
    %p135 = por %p133, %p134
    %s137 = sadd.s32 %s136, 1
    %p140 = scmp.eq.s32.totalorder %s14, 1
    %p141 = scmp.ne.s32.totalorder %s136, %s138
    %p142 = scmp.eq.s32.totalorder %s14, 0
    %p143 = por %p141, %p142
    %p144 = scmp.ne.s32.totalorder %s136, %s138
    %p145 = scmp.eq.s32.totalorder %s19, 1
    %p146 = por %p144, %p145
    %p147 = scmp.ne.s32.totalorder %s138, %s139
    %p148 = scmp.eq.s32.totalorder %s19, 0
    %p149 = por %p147, %p148
    %p150 = scmp.ne.s32.totalorder %s138, %s139
    %p151 = scmp.eq.s32.totalorder %s20, 1
    %p152 = por %p150, %p151
    %p154 = scmp.ne.s32.totalorder %s139, %s153
    %p155 = scmp.eq.s32.totalorder %s20, 0
    %p156 = por %p154, %p155
    %s158 = sadd.s32 %s157, 1
    %p161 = scmp.eq.s32.totalorder %s14, 1
    %p162 = scmp.ne.s32.totalorder %s157, %s159
    %p163 = scmp.eq.s32.totalorder %s14, 0
    %p164 = por %p162, %p163
    %p165 = scmp.ne.s32.totalorder %s157, %s159
    %p166 = scmp.eq.s32.totalorder %s19, 1
    %p167 = por %p165, %p166
    %p168 = scmp.ne.s32.totalorder %s159, %s160
    %p169 = scmp.eq.s32.totalorder %s19, 0
    %p170 = por %p168, %p169
    %p171 = scmp.ne.s32.totalorder %s159, %s160
    %p172 = scmp.eq.s32.totalorder %s20, 1
    %p173 = por %p171, %p172
    %p175 = scmp.ne.s32.totalorder %s160, %s174
    %p176 = scmp.eq.s32.totalorder %s20, 0
    %p177 = por %p175, %p176
    %s178 = ssub.s32 %s21, %s33
    %s179 = ssub.s32 %s22, %s29
    %s180 = sor.u32 %s178, %s179
    %p181 = scmp.eq.s32.totalorder %s180, 0
    %s183 = sadd.s32 %s182, 1
    %s184 = scalar_select %p181, %s182, %s183
    %p187 = pneg %p181
    %p188 = scmp.eq.s32.totalorder %s14, 1
    %p189 = por %p187, %p188
    %p190 = scmp.ne.s32.totalorder %s182, %s185
    %p191 = scmp.eq.s32.totalorder %s14, 0
    %p192 = por %p190, %p191
    %p193 = scmp.ne.s32.totalorder %s182, %s185
    %p194 = scmp.eq.s32.totalorder %s19, 1
    %p195 = por %p193, %p194
    %p196 = scmp.ne.s32.totalorder %s185, %s186
    %p197 = scmp.eq.s32.totalorder %s19, 0
    %p198 = por %p196, %p197
    %p199 = scmp.ne.s32.totalorder %s185, %s186
    %p200 = scmp.eq.s32.totalorder %s20, 1
    %p201 = por %p199, %p200
    %p203 = scmp.ne.s32.totalorder %s186, %s202
    %p204 = scmp.eq.s32.totalorder %s20, 0
    %p205 = por %p203, %p204
    %s206 = ssub.s32 %s21, %s33
    %s207 = ssub.s32 %s22, %s29
    %s208 = sor.u32 %s206, %s207
    %p209 = scmp.eq.s32.totalorder %s208, 0
    %s211 = sadd.s32 %s210, 1
    %s212 = scalar_select %p209, %s210, %s211
    %p215 = pneg %p209
    %p216 = scmp.eq.s32.totalorder %s14, 1
    %p217 = por %p215, %p216
    %p218 = scmp.ne.s32.totalorder %s210, %s213
    %p219 = scmp.eq.s32.totalorder %s14, 0
    %p220 = por %p218, %p219
    %p221 = scmp.ne.s32.totalorder %s210, %s213
    %p222 = scmp.eq.s32.totalorder %s19, 1
    %p223 = por %p221, %p222
    %p224 = scmp.ne.s32.totalorder %s213, %s214
    %p225 = scmp.eq.s32.totalorder %s19, 0
    %p226 = por %p224, %p225
    %p227 = scmp.ne.s32.totalorder %s213, %s214
    %p228 = scmp.eq.s32.totalorder %s20, 1
    %p229 = por %p227, %p228
    %p231 = scmp.ne.s32.totalorder %s214, %s230
    %p232 = scmp.eq.s32.totalorder %s20, 0
    %p233 = por %p231, %p232
    %p234 = scmp.le.s32.totalorder 1, %s14
    %p235 = scmp.lt.s32.totalorder %s14, 3
    %p236 = pnand %p234, %p235
    %p237 = pneg %p236
    // Predicated region
    $region9: #{bevnet_forward.1} parent=5 // pred_check
      _
    $region10: #{bevnet_forward.1} parent=5 // pred_check_branch
      %239 = sbr.rel (%p236) target = $region12
    $region11: #{bevnet_forward.1} parent=5 // pred_region
      %s240 = ssub.s32 %s14, 1
      // Predicated region
      $region13: #{bevnet_forward.1} parent=11 // pred_check
        %p241 = pneg %p107
      $region14: #{bevnet_forward.1} parent=11 // pred_check_branch
        %243 = sbr.rel (%p241) target = $region16
      $region15: #{bevnet_forward.1} parent=11 // pred_region
        _
      $region16: #{bevnet_forward.1} parent=11 // pred_fallthru
        _
      // Predicated region
      $region17: #{bevnet_forward.1} parent=11 // pred_check
        %p244 = pneg %p128
      $region18: #{bevnet_forward.1} parent=11 // pred_check_branch
        %246 = sbr.rel (%p244) target = $region20
      $region19: #{bevnet_forward.1} parent=11 // pred_region
        _
      $region20: #{bevnet_forward.1} parent=11 // pred_fallthru
        _
      // Predicated region
      $region21: #{bevnet_forward.1} parent=11 // pred_check
        %p247 = pneg %p149
      $region22: #{bevnet_forward.1} parent=11 // pred_check_branch
        %249 = sbr.rel (%p247) target = $region24
      $region23: #{bevnet_forward.1} parent=11 // pred_region
        _
      $region24: #{bevnet_forward.1} parent=11 // pred_fallthru
        _
      // Predicated region
      $region25: #{bevnet_forward.1} parent=11 // pred_check
        %p250 = pneg %p170
      $region26: #{bevnet_forward.1} parent=11 // pred_check_branch
        %252 = sbr.rel (%p250) target = $region28
      $region27: #{bevnet_forward.1} parent=11 // pred_region
        _
      $region28: #{bevnet_forward.1} parent=11 // pred_fallthru
        _
    $region12: #{bevnet_forward.1} parent=5 // pred_fallthru
      _
    %p253 = scmp.lt.s32.totalorder %s14, 2
    // Predicated region
    $region29: #{bevnet_forward.1} parent=5 // pred_check
      %p254 = pneg %p253
    $region30: #{bevnet_forward.1} parent=5 // pred_check_branch
      %256 = sbr.rel (%p254) target = $region32
    $region31: #{bevnet_forward.1} parent=5 // pred_region
      // Predicated region
      $region33: #{bevnet_forward.1} parent=31 // pred_check
        %p257 = pneg %p48
      $region34: #{bevnet_forward.1} parent=31 // pred_check_branch
        %259 = sbr.rel (%p257) target = $region36
      $region35: #{bevnet_forward.1} parent=31 // pred_region
        %s260 = smul.u32 3, %s22
        %s261 = ssub.s32 4, %s260
        %p262 = scmp.lt.s32.totalorder %s261, 3
        %s263 = scalar_select %p262, %s261, 3
        %s264 = smul.u32 2, %s263
        %p265 = scmp.lt.s32.totalorder %s21, 1
        %s266 = scalar_select %p265, %s21, 1
        %p267 = scmp.lt.s32.totalorder %s260, 3
        %s268 = scalar_select %p267, %s260, 3
        %s269 = smul.addr %s266, 4
        %s270 = sadd.s32 %s268, %s269
        %s271 = smul.addr %s270, 2
        %s272 = scalar_lea.vmem %s0, %s271
        %s273 = smul.u32 3, %s22
        %s274 = ssub.s32 4, %s273
        %p275 = scmp.lt.s32.totalorder %s274, 3
        %s276 = scalar_select %p275, %s274, 3
        %s277 = smul.u32 2, %s276
      $region36: #{bevnet_forward.1} parent=31 // pred_fallthru
        _
      // Predicated region
      $region37: #{bevnet_forward.1} parent=31 // pred_check
        %p278 = pneg %p80
      $region38: #{bevnet_forward.1} parent=31 // pred_check_branch
        %280 = sbr.rel (%p278) target = $region40
      $region39: #{bevnet_forward.1} parent=31 // pred_region
        %s281 = sadd.s32 %s22, 1
        %s282 = smul.u32 %s281, 3
        %p283 = scmp.lt.s32.totalorder %s21, 1
        %s284 = scalar_select %p283, %s21, 1
        %p285 = scmp.lt.s32.totalorder %s282, 3
        %s286 = scalar_select %p285, %s282, 3
        %s287 = smul.addr %s284, 4
        %s288 = sadd.s32 %s286, %s287
        %s289 = smul.addr %s288, 2
        %s290 = scalar_lea.vmem %s1, %s289
        %s291 = sadd.s32 %s22, 1
        %s292 = smul.u32 %s291, 3
      $region40: #{bevnet_forward.1} parent=31 // pred_fallthru
        _
    $region32: #{bevnet_forward.1} parent=5 // pred_fallthru
      _
    %p293 = scmp.le.s32.totalorder 1, %s14
    %p294 = scmp.lt.s32.totalorder %s14, 3
    %p295 = pnand %p293, %p294
    %p296 = pneg %p295
    // Predicated region
    $region41: #{bevnet_forward.1} parent=5 // pred_check
      _
    $region42: #{bevnet_forward.1} parent=5 // pred_check_branch
      %298 = sbr.rel (%p295) target = $region44
    $region43: #{bevnet_forward.1} parent=5 // pred_region
      %s299 = ssub.s32 %s14, 1
      %s300 = smul.u32 3, %s24
      %s301 = ssub.s32 4, %s300
      %p302 = scmp.lt.s32.totalorder %s301, 3
      %s303 = scalar_select %p302, %s301, 3
      %s304 = smul.u32 2, %s303
      %p305 = scmp.lt.s32.totalorder %s23, 1
      %s306 = scalar_select %p305, %s23, 1
      %p307 = scmp.lt.s32.totalorder %s300, 3
      %s308 = scalar_select %p307, %s300, 3
      %s309 = smul.addr %s306, 4
      %s310 = sadd.s32 %s308, %s309
      %s311 = smul.addr %s310, 2
      %s312 = scalar_lea.vmem %s0, %s311
      %p313 = pneg %p54
      %p314 = pneg %p51
      %s315 = sadd.s32 %s24, 1
      %s316 = smul.u32 %s315, 3
      %p317 = scmp.lt.s32.totalorder %s23, 1
      %s318 = scalar_select %p317, %s23, 1
      %p319 = scmp.lt.s32.totalorder %s316, 3
      %s320 = scalar_select %p319, %s316, 3
      %s321 = smul.addr %s318, 4
      %s322 = sadd.s32 %s320, %s321
      %s323 = smul.addr %s322, 2
      %s324 = scalar_lea.vmem %s1, %s323
      %p325 = pneg %p86
      %p326 = pneg %p83
      %p327 = pneg %p107
      %p328 = pneg %p104
      %p329 = pneg %p128
      %p330 = pneg %p125
      %p331 = pneg %p149
      %p332 = pneg %p146
      %p333 = pneg %p170
      %p334 = pneg %p167
      %p335 = pneg %p198
      %p336 = pneg %p195
      %s337 = smul.u32 3, %s24
      %p338 = scmp.lt.s32.totalorder %s23, 1
      %s339 = scalar_select %p338, %s23, 1
      %p340 = scmp.lt.s32.totalorder %s337, 2
      %s341 = scalar_select %p340, %s337, 2
      %s342 = smul.addr %s339, 6
      %s343 = sadd.s32 %s341, %s342
      %s344 = smul.addr %s343, 4
      %s345 = scalar_lea.vmem %s6, %s344
      %p346 = pneg %p226
      %p347 = pneg %p223
      %s348 = smul.u32 3, %s24
      %p349 = scmp.lt.s32.totalorder %s23, 1
      %s350 = scalar_select %p349, %s23, 1
      %p351 = scmp.lt.s32.totalorder %s348, 2
      %s352 = scalar_select %p351, %s348, 2
      %s353 = smul.addr %s350, 3
      %s354 = sadd.s32 %s352, %s353
      %s355 = smul.addr %s354, 2
      %s356 = scalar_lea.vmem %s7, %s355
      %s357 = smul.u32 3, %s24
      %s358 = ssub.s32 4, %s357
      %p359 = scmp.lt.s32.totalorder %s358, 3
      %s360 = scalar_select %p359, %s358, 3
      %s361 = smul.u32 2, %s360
      %p362 = scmp.lt.s32.totalorder %s23, 1
      %s363 = scalar_select %p362, %s23, 1
      %p364 = scmp.lt.s32.totalorder %s357, 3
      %s365 = scalar_select %p364, %s357, 3
      %s366 = smul.addr %s363, 4
      %s367 = sadd.s32 %s365, %s366
      %s368 = smul.addr %s367, 2
      %s369 = scalar_lea.vmem %s0, %s368
      %s370 = smul.u32 3, %s24
      %s371 = ssub.s32 4, %s370
      %p372 = scmp.lt.s32.totalorder %s371, 3
      %s373 = scalar_select %p372, %s371, 3
      %s374 = smul.u32 2, %s373
      %s375 = sadd.s32 %s24, 1
      %s376 = smul.u32 %s375, 3
      %p377 = scmp.lt.s32.totalorder %s23, 1
      %s378 = scalar_select %p377, %s23, 1
      %p379 = scmp.lt.s32.totalorder %s376, 3
      %s380 = scalar_select %p379, %s376, 3
      %s381 = smul.addr %s378, 4
      %s382 = sadd.s32 %s380, %s381
      %s383 = smul.addr %s382, 2
      %s384 = scalar_lea.vmem %s1, %s383
      %s385 = sadd.s32 %s24, 1
      %s386 = smul.u32 %s385, 3
      %s387 = smul.u32 3, %s24
      %p388 = scmp.lt.s32.totalorder %s23, 1
      %s389 = scalar_select %p388, %s23, 1
      %p390 = scmp.lt.s32.totalorder %s387, 2
      %s391 = scalar_select %p390, %s387, 2
      %s392 = smul.addr %s389, 6
      %s393 = sadd.s32 %s391, %s392
      %s394 = smul.addr %s393, 4
      %s395 = scalar_lea.vmem %s6, %s394
      %s396 = smul.u32 3, %s24
      %s397 = smul.u32 3, %s24
      %p398 = scmp.lt.s32.totalorder %s23, 1
      %s399 = scalar_select %p398, %s23, 1
      %p400 = scmp.lt.s32.totalorder %s397, 2
      %s401 = scalar_select %p400, %s397, 2
      %s402 = smul.addr %s399, 3
      %s403 = sadd.s32 %s401, %s402
      %s404 = smul.addr %s403, 2
      %s405 = scalar_lea.vmem %s7, %s404
      %s406 = smul.u32 3, %s24
      %v408 = vld [vmem:[%s369] sm:$0x3f]
      %v409 = vld [vmem:[%s384] sm:$0x3]
      %411 = vst [vmem:[#allocation1] ss:$4 sm:$0xff] %v408
      %v412 = vld.sshfl [vmem:[#allocation1] sm:$0xff pattern:$0x73625140]
      %v414 = vld.sshfl [vmem:[#allocation1 + $0x8] sm:$0xff pattern:$0x73625140]
      %v416 = vld.sshfl [vmem:[#allocation1 + $0x10] sm:$0xff pattern:$0x73625140]
      %v418 = vld [vmem:[%s2] sm:$0xf]
      %v419 = vld [vmem:[%s2 + $0x4] sm:$0x1]
      %s420 = scalar_lea.vmem %s2, 8
      %v421 = vld [vmem:[%s420] sm:$0xf]
      %v422 = vld [vmem:[%s420 + $0x4] sm:$0x1]
      %v425 = vunpack.c.l.b16 %v421
      %v426 = vunpack.c.l.b16 %v422
      %v427 = vpack.c.b16 %v426, %v425
      %429 = vrot.lane.b32.xlu0 %v412, 127
      %v430 = vpop.permute.xlu0 %429
      %431 = vrot.lane.b32.xlu0 %v414, 127
      %v432 = vpop.permute.xlu0 %431
      %433 = vrot.lane.b32.xlu0 %v416, 127
      %v434 = vpop.permute.xlu0 %433
      %435 = vrot.lane.b32.xlu0 %v409, 127
      %v436 = vpop.permute.xlu0 %435
      %vm437 = vcmask 1039360
      %v438 = vsel %vm437, %v430, %v432
      %v439 = vsel %vm437, %v432, %v434
      %v440 = vsel %vm437, %v434, %v436
      %vm441 = vcmask 23552
      %v443 = vsel %vm441, %v427, 0
      %vm445 = vcmask 1040384
      %vm446 = vcmask 1041408
      %v447 = vsel %vm445, 4294967295, 65535
      %v448 = vsel %vm446, %v447, 0
      %v450 = vand.u32 %v438, %v448
      %v453 = vand.u32 %v439, %v448
      %v456 = vand.u32 %v440, %v448
      %458 = vmatpush.bf16.msra.mxu0 0
      %459 = vmatpush.bf16.msra.mxu0 0
      %460 = vmatpush.bf16.msra.mxu0 0
      %461 = vmatpush.bf16.msra.mxu0 0
      %462 = vmatpush.bf16.msra.mxu0 0
      %463 = vmatpush.bf16.msra.mxu0 0
      %464 = vmatpush.bf16.msra.mxu0 0
      %465 = vmatpush.bf16.msra.mxu0 %v450
      %466 = vmatmul.bf16.gmra.mxu0 %v443
      %v467 = vpop.f32.mrf.mxu0
      %v468 = vadd.f32 0.0, %v467
      %v469 = vpop.f32.mrf.mxu0
      %v470 = vadd.f32 0.0, %v469
      %471 = vdwg.mxu0
      %472 = vmatpush.bf16.msra.mxu0 0
      %473 = vmatpush.bf16.msra.mxu0 0
      %474 = vmatpush.bf16.msra.mxu0 0
      %475 = vmatpush.bf16.msra.mxu0 0
      %476 = vmatpush.bf16.msra.mxu0 0
      %477 = vmatpush.bf16.msra.mxu0 0
      %478 = vmatpush.bf16.msra.mxu0 0
      %479 = vmatpush.bf16.msra.mxu0 %v453
      %480 = vmatmul.bf16.gmra.mxu0 %v443
      %v481 = vpop.f32.mrf.mxu0
      %v482 = vadd.f32 0.0, %v481
      %v483 = vpop.f32.mrf.mxu0
      %v484 = vadd.f32 0.0, %v483
      %485 = vdwg.mxu0
      %486 = vmatpush.bf16.msra.mxu0 0
      %487 = vmatpush.bf16.msra.mxu0 0
      %488 = vmatpush.bf16.msra.mxu0 0
      %489 = vmatpush.bf16.msra.mxu0 0
      %490 = vmatpush.bf16.msra.mxu0 0
      %491 = vmatpush.bf16.msra.mxu0 0
      %492 = vmatpush.bf16.msra.mxu0 0
      %493 = vmatpush.bf16.msra.mxu0 %v456
      %494 = vmatmul.bf16.gmra.mxu0 %v443
      %v495 = vpop.f32.mrf.mxu0
      %v496 = vadd.f32 0.0, %v495
      %v497 = vpop.f32.mrf.mxu0
      %v498 = vadd.f32 0.0, %v497
      %499 = vdwg.mxu0
      %v502 = vunpack.c.l.b16 %v418
      %v503 = vunpack.c.l.b16 %v419
      %v504 = vpack.c.b16 %v503, %v502
      %v506 = vsel %vm441, %v504, 0
      %v508 = vand.u32 %v412, %v448
      %v510 = vand.u32 %v414, %v448
      %v512 = vand.u32 %v416, %v448
      %514 = vmatpush.bf16.msra.mxu0 0
      %515 = vmatpush.bf16.msra.mxu0 0
      %516 = vmatpush.bf16.msra.mxu0 0
      %517 = vmatpush.bf16.msra.mxu0 0
      %518 = vmatpush.bf16.msra.mxu0 0
      %519 = vmatpush.bf16.msra.mxu0 0
      %520 = vmatpush.bf16.msra.mxu0 0
      %521 = vmatpush.bf16.msra.mxu0 %v508
      %522 = vmatmul.bf16.gmra.mxu0 %v506
      %v523 = vpop.f32.mrf.mxu0
      %v524 = vadd.f32 %v468, %v523
      %v525 = vpop.f32.mrf.mxu0
      %v526 = vadd.f32 %v470, %v525
      %527 = vdwg.mxu0
      %528 = vmatpush.bf16.msra.mxu0 0
      %529 = vmatpush.bf16.msra.mxu0 0
      %530 = vmatpush.bf16.msra.mxu0 0
      %531 = vmatpush.bf16.msra.mxu0 0
      %532 = vmatpush.bf16.msra.mxu0 0
      %533 = vmatpush.bf16.msra.mxu0 0
      %534 = vmatpush.bf16.msra.mxu0 0
      %535 = vmatpush.bf16.msra.mxu0 %v510
      %536 = vmatmul.bf16.gmra.mxu0 %v506
      %v537 = vpop.f32.mrf.mxu0
      %v538 = vadd.f32 %v482, %v537
      %v539 = vpop.f32.mrf.mxu0
      %v540 = vadd.f32 %v484, %v539
      %541 = vdwg.mxu0
      %542 = vmatpush.bf16.msra.mxu0 0
      %543 = vmatpush.bf16.msra.mxu0 0
      %544 = vmatpush.bf16.msra.mxu0 0
      %545 = vmatpush.bf16.msra.mxu0 0
      %546 = vmatpush.bf16.msra.mxu0 0
      %547 = vmatpush.bf16.msra.mxu0 0
      %548 = vmatpush.bf16.msra.mxu0 0
      %549 = vmatpush.bf16.msra.mxu0 %v512
      %550 = vmatmul.bf16.gmra.mxu0 %v506
      %v551 = vpop.f32.mrf.mxu0
      %v552 = vadd.f32 %v496, %v551
      %v553 = vpop.f32.mrf.mxu0
      %v554 = vadd.f32 %v498, %v553
      %555 = vdwg.mxu0
      %s556 = scalar_lea.vmem %s2, 16
      %v557 = vld [vmem:[%s556] sm:$0xf]
      %v558 = vld [vmem:[%s556 + $0x4] sm:$0x1]
      %v561 = vunpack.c.l.b16 %v557
      %v562 = vunpack.c.l.b16 %v558
      %v563 = vpack.c.b16 %v562, %v561
      %564 = vrot.lane.b32.xlu0 %v412, 126
      %v565 = vpop.permute.xlu0 %564
      %566 = vrot.lane.b32.xlu0 %v414, 126
      %v567 = vpop.permute.xlu0 %566
      %568 = vrot.lane.b32.xlu0 %v416, 126
      %v569 = vpop.permute.xlu0 %568
      %570 = vrot.lane.b32.xlu0 %v409, 126
      %v571 = vpop.permute.xlu0 %570
      %vm572 = vcmask 1031168
      %v573 = vsel %vm572, %v565, %v567
      %v574 = vsel %vm572, %v567, %v569
      %v575 = vsel %vm572, %v569, %v571
      %v577 = vsel %vm441, %v563, 0
      %v580 = vand.u32 %v573, %v448
      %v583 = vand.u32 %v574, %v448
      %v586 = vand.u32 %v575, %v448
      %588 = vmatpush.bf16.msra.mxu0 0
      %589 = vmatpush.bf16.msra.mxu0 0
      %590 = vmatpush.bf16.msra.mxu0 0
      %591 = vmatpush.bf16.msra.mxu0 0
      %592 = vmatpush.bf16.msra.mxu0 0
      %593 = vmatpush.bf16.msra.mxu0 0
      %594 = vmatpush.bf16.msra.mxu0 0
      %595 = vmatpush.bf16.msra.mxu0 %v580
      %596 = vmatmul.bf16.gmra.mxu0 %v577
      %v597 = vpop.f32.mrf.mxu0
      %v598 = vadd.f32 0.0, %v597
      %v599 = vpop.f32.mrf.mxu0
      %v600 = vadd.f32 0.0, %v599
      %601 = vdwg.mxu0
      %602 = vmatpush.bf16.msra.mxu0 0
      %603 = vmatpush.bf16.msra.mxu0 0
      %604 = vmatpush.bf16.msra.mxu0 0
      %605 = vmatpush.bf16.msra.mxu0 0
      %606 = vmatpush.bf16.msra.mxu0 0
      %607 = vmatpush.bf16.msra.mxu0 0
      %608 = vmatpush.bf16.msra.mxu0 0
      %609 = vmatpush.bf16.msra.mxu0 %v583
      %610 = vmatmul.bf16.gmra.mxu0 %v577
      %v611 = vpop.f32.mrf.mxu0
      %v612 = vadd.f32 0.0, %v611
      %v613 = vpop.f32.mrf.mxu0
      %v614 = vadd.f32 0.0, %v613
      %615 = vdwg.mxu0
      %616 = vmatpush.bf16.msra.mxu0 0
      %617 = vmatpush.bf16.msra.mxu0 0
      %618 = vmatpush.bf16.msra.mxu0 0
      %619 = vmatpush.bf16.msra.mxu0 0
      %620 = vmatpush.bf16.msra.mxu0 0
      %621 = vmatpush.bf16.msra.mxu0 0
      %622 = vmatpush.bf16.msra.mxu0 0
      %623 = vmatpush.bf16.msra.mxu0 %v586
      %624 = vmatmul.bf16.gmra.mxu0 %v577
      %v625 = vpop.f32.mrf.mxu0
      %v626 = vadd.f32 0.0, %v625
      %v627 = vpop.f32.mrf.mxu0
      %v628 = vadd.f32 0.0, %v627
      %629 = vdwg.mxu0
      %v630 = vadd.f32 %v524, %v598
      %v631 = vadd.f32 %v538, %v612
      %v632 = vadd.f32 %v552, %v626
      %v633 = vadd.f32 %v526, %v600
      %v634 = vadd.f32 %v540, %v614
      %v635 = vadd.f32 %v554, %v628
      %s636 = scalar_lea.vmem %s2, 24
      %v637 = vld [vmem:[%s636] sm:$0xf]
      %v638 = vld [vmem:[%s636 + $0x4] sm:$0x1]
      %v641 = vunpack.c.l.b16 %v637
      %v642 = vunpack.c.l.b16 %v638
      %v643 = vpack.c.b16 %v642, %v641
      %644 = vrot.lane.b32.xlu0 %v412, 110
      %v645 = vpop.permute.xlu0 %644
      %646 = vrot.lane.b32.xlu0 %v414, 110
      %v647 = vpop.permute.xlu0 %646
      %648 = vrot.lane.b32.xlu0 %v416, 110
      %v649 = vpop.permute.xlu0 %648
      %650 = vrot.lane.b32.xlu0 %v409, 110
      %v651 = vpop.permute.xlu0 %650
      %vm652 = vcmask 900096
      %v653 = vsel %vm652, %v645, %v647
      %v654 = vsel %vm652, %v647, %v649
      %v655 = vsel %vm652, %v649, %v651
      %v657 = vsel %vm441, %v643, 0
      %v660 = vand.u32 %v653, %v448
      %v663 = vand.u32 %v654, %v448
      %v666 = vand.u32 %v655, %v448
      %668 = vmatpush.bf16.msra.mxu0 0
      %669 = vmatpush.bf16.msra.mxu0 0
      %670 = vmatpush.bf16.msra.mxu0 0
      %671 = vmatpush.bf16.msra.mxu0 0
      %672 = vmatpush.bf16.msra.mxu0 0
      %673 = vmatpush.bf16.msra.mxu0 0
      %674 = vmatpush.bf16.msra.mxu0 0
      %675 = vmatpush.bf16.msra.mxu0 %v660
      %676 = vmatmul.bf16.gmra.mxu0 %v657
      %v677 = vpop.f32.mrf.mxu0
      %v678 = vadd.f32 0.0, %v677
      %v679 = vpop.f32.mrf.mxu0
      %v680 = vadd.f32 0.0, %v679
      %681 = vdwg.mxu0
      %682 = vmatpush.bf16.msra.mxu0 0
      %683 = vmatpush.bf16.msra.mxu0 0
      %684 = vmatpush.bf16.msra.mxu0 0
      %685 = vmatpush.bf16.msra.mxu0 0
      %686 = vmatpush.bf16.msra.mxu0 0
      %687 = vmatpush.bf16.msra.mxu0 0
      %688 = vmatpush.bf16.msra.mxu0 0
      %689 = vmatpush.bf16.msra.mxu0 %v663
      %690 = vmatmul.bf16.gmra.mxu0 %v657
      %v691 = vpop.f32.mrf.mxu0
      %v692 = vadd.f32 0.0, %v691
      %v693 = vpop.f32.mrf.mxu0
      %v694 = vadd.f32 0.0, %v693
      %695 = vdwg.mxu0
      %696 = vmatpush.bf16.msra.mxu0 0
      %697 = vmatpush.bf16.msra.mxu0 0
      %698 = vmatpush.bf16.msra.mxu0 0
      %699 = vmatpush.bf16.msra.mxu0 0
      %700 = vmatpush.bf16.msra.mxu0 0
      %701 = vmatpush.bf16.msra.mxu0 0
      %702 = vmatpush.bf16.msra.mxu0 0
      %703 = vmatpush.bf16.msra.mxu0 %v666
      %704 = vmatmul.bf16.gmra.mxu0 %v657
      %v705 = vpop.f32.mrf.mxu0
      %v706 = vadd.f32 0.0, %v705
      %v707 = vpop.f32.mrf.mxu0
      %v708 = vadd.f32 0.0, %v707
      %709 = vdwg.mxu0
      %v710 = vadd.f32 %v630, %v678
      %v711 = vadd.f32 %v631, %v692
      %v712 = vadd.f32 %v632, %v706
      %v713 = vadd.f32 %v633, %v680
      %v714 = vadd.f32 %v634, %v694
      %v715 = vadd.f32 %v635, %v708
      %s716 = scalar_lea.vmem %s2, 32
      %v717 = vld [vmem:[%s716] sm:$0xf]
      %v718 = vld [vmem:[%s716 + $0x4] sm:$0x1]
      %v721 = vunpack.c.l.b16 %v717
      %v722 = vunpack.c.l.b16 %v718
      %v723 = vpack.c.b16 %v722, %v721
      %724 = vrot.lane.b32.xlu0 %v412, 109
      %v725 = vpop.permute.xlu0 %724
      %726 = vrot.lane.b32.xlu0 %v414, 109
      %v727 = vpop.permute.xlu0 %726
      %728 = vrot.lane.b32.xlu0 %v416, 109
      %v729 = vpop.permute.xlu0 %728
      %730 = vrot.lane.b32.xlu0 %v409, 109
      %v731 = vpop.permute.xlu0 %730
      %vm732 = vcmask 891904
      %v733 = vsel %vm732, %v725, %v727
      %v734 = vsel %vm732, %v727, %v729
      %v735 = vsel %vm732, %v729, %v731
      %v737 = vsel %vm441, %v723, 0
      %v740 = vand.u32 %v733, %v448
      %v743 = vand.u32 %v734, %v448
      %v746 = vand.u32 %v735, %v448
      %748 = vmatpush.bf16.msra.mxu0 0
      %749 = vmatpush.bf16.msra.mxu0 0
      %750 = vmatpush.bf16.msra.mxu0 0
      %751 = vmatpush.bf16.msra.mxu0 0
      %752 = vmatpush.bf16.msra.mxu0 0
      %753 = vmatpush.bf16.msra.mxu0 0
      %754 = vmatpush.bf16.msra.mxu0 0
      %755 = vmatpush.bf16.msra.mxu0 %v740
      %756 = vmatmul.bf16.gmra.mxu0 %v737
      %v757 = vpop.f32.mrf.mxu0
      %v758 = vadd.f32 0.0, %v757
      %v759 = vpop.f32.mrf.mxu0
      %v760 = vadd.f32 0.0, %v759
      %761 = vdwg.mxu0
      %762 = vmatpush.bf16.msra.mxu0 0
      %763 = vmatpush.bf16.msra.mxu0 0
      %764 = vmatpush.bf16.msra.mxu0 0
      %765 = vmatpush.bf16.msra.mxu0 0
      %766 = vmatpush.bf16.msra.mxu0 0
      %767 = vmatpush.bf16.msra.mxu0 0
      %768 = vmatpush.bf16.msra.mxu0 0
      %769 = vmatpush.bf16.msra.mxu0 %v743
      %770 = vmatmul.bf16.gmra.mxu0 %v737
      %v771 = vpop.f32.mrf.mxu0
      %v772 = vadd.f32 0.0, %v771
      %v773 = vpop.f32.mrf.mxu0
      %v774 = vadd.f32 0.0, %v773
      %775 = vdwg.mxu0
      %776 = vmatpush.bf16.msra.mxu0 0
      %777 = vmatpush.bf16.msra.mxu0 0
      %778 = vmatpush.bf16.msra.mxu0 0
      %779 = vmatpush.bf16.msra.mxu0 0
      %780 = vmatpush.bf16.msra.mxu0 0
      %781 = vmatpush.bf16.msra.mxu0 0
      %782 = vmatpush.bf16.msra.mxu0 0
      %783 = vmatpush.bf16.msra.mxu0 %v746
      %784 = vmatmul.bf16.gmra.mxu0 %v737
      %v785 = vpop.f32.mrf.mxu0
      %v786 = vadd.f32 0.0, %v785
      %v787 = vpop.f32.mrf.mxu0
      %v788 = vadd.f32 0.0, %v787
      %789 = vdwg.mxu0
      %v790 = vadd.f32 %v710, %v758
      %v791 = vadd.f32 %v711, %v772
      %v792 = vadd.f32 %v712, %v786
      %v793 = vadd.f32 %v713, %v760
      %v794 = vadd.f32 %v714, %v774
      %v795 = vadd.f32 %v715, %v788
      %s796 = scalar_lea.vmem %s2, 40
      %v797 = vld [vmem:[%s796] sm:$0xf]
      %v798 = vld [vmem:[%s796 + $0x4] sm:$0x1]
      %v801 = vunpack.c.l.b16 %v797
      %v802 = vunpack.c.l.b16 %v798
      %v803 = vpack.c.b16 %v802, %v801
      %804 = vrot.lane.b32.xlu0 %v412, 108
      %v805 = vpop.permute.xlu0 %804
      %806 = vrot.lane.b32.xlu0 %v414, 108
      %v807 = vpop.permute.xlu0 %806
      %808 = vrot.lane.b32.xlu0 %v416, 108
      %v809 = vpop.permute.xlu0 %808
      %810 = vrot.lane.b32.xlu0 %v409, 108
      %v811 = vpop.permute.xlu0 %810
      %vm812 = vcmask 883712
      %v813 = vsel %vm812, %v805, %v807
      %v814 = vsel %vm812, %v807, %v809
      %v815 = vsel %vm812, %v809, %v811
      %v817 = vsel %vm441, %v803, 0
      %v820 = vand.u32 %v813, %v448
      %v823 = vand.u32 %v814, %v448
      %v826 = vand.u32 %v815, %v448
      %828 = vmatpush.bf16.msra.mxu0 0
      %829 = vmatpush.bf16.msra.mxu0 0
      %830 = vmatpush.bf16.msra.mxu0 0
      %831 = vmatpush.bf16.msra.mxu0 0
      %832 = vmatpush.bf16.msra.mxu0 0
      %833 = vmatpush.bf16.msra.mxu0 0
      %834 = vmatpush.bf16.msra.mxu0 0
      %835 = vmatpush.bf16.msra.mxu0 %v820
      %836 = vmatmul.bf16.gmra.mxu0 %v817
      %v837 = vpop.f32.mrf.mxu0
      %v838 = vadd.f32 0.0, %v837
      %v839 = vpop.f32.mrf.mxu0
      %v840 = vadd.f32 0.0, %v839
      %841 = vdwg.mxu0
      %842 = vmatpush.bf16.msra.mxu0 0
      %843 = vmatpush.bf16.msra.mxu0 0
      %844 = vmatpush.bf16.msra.mxu0 0
      %845 = vmatpush.bf16.msra.mxu0 0
      %846 = vmatpush.bf16.msra.mxu0 0
      %847 = vmatpush.bf16.msra.mxu0 0
      %848 = vmatpush.bf16.msra.mxu0 0
      %849 = vmatpush.bf16.msra.mxu0 %v823
      %850 = vmatmul.bf16.gmra.mxu0 %v817
      %v851 = vpop.f32.mrf.mxu0
      %v852 = vadd.f32 0.0, %v851
      %v853 = vpop.f32.mrf.mxu0
      %v854 = vadd.f32 0.0, %v853
      %855 = vdwg.mxu0
      %856 = vmatpush.bf16.msra.mxu0 0
      %857 = vmatpush.bf16.msra.mxu0 0
      %858 = vmatpush.bf16.msra.mxu0 0
      %859 = vmatpush.bf16.msra.mxu0 0
      %860 = vmatpush.bf16.msra.mxu0 0
      %861 = vmatpush.bf16.msra.mxu0 0
      %862 = vmatpush.bf16.msra.mxu0 0
      %863 = vmatpush.bf16.msra.mxu0 %v826
      %864 = vmatmul.bf16.gmra.mxu0 %v817
      %v865 = vpop.f32.mrf.mxu0
      %v866 = vadd.f32 0.0, %v865
      %v867 = vpop.f32.mrf.mxu0
      %v868 = vadd.f32 0.0, %v867
      %869 = vdwg.mxu0
      %v870 = vadd.f32 %v790, %v838
      %v871 = vadd.f32 %v791, %v852
      %v872 = vadd.f32 %v792, %v866
      %v873 = vadd.f32 %v793, %v840
      %v874 = vadd.f32 %v794, %v854
      %v875 = vadd.f32 %v795, %v868
      %s876 = scalar_lea.vmem %s2, 48
      %v877 = vld [vmem:[%s876] sm:$0xf]
      %v878 = vld [vmem:[%s876 + $0x4] sm:$0x1]
      %v881 = vunpack.c.l.b16 %v877
      %v882 = vunpack.c.l.b16 %v878
      %v883 = vpack.c.b16 %v882, %v881
      %884 = vrot.lane.b32.xlu0 %v412, 92
      %v885 = vpop.permute.xlu0 %884
      %886 = vrot.lane.b32.xlu0 %v414, 92
      %v887 = vpop.permute.xlu0 %886
      %888 = vrot.lane.b32.xlu0 %v416, 92
      %v889 = vpop.permute.xlu0 %888
      %890 = vrot.lane.b32.xlu0 %v409, 92
      %v891 = vpop.permute.xlu0 %890
      %vm892 = vcmask 752640
      %v893 = vsel %vm892, %v885, %v887
      %v894 = vsel %vm892, %v887, %v889
      %v895 = vsel %vm892, %v889, %v891
      %v897 = vsel %vm441, %v883, 0
      %v900 = vand.u32 %v893, %v448
      %v903 = vand.u32 %v894, %v448
      %v906 = vand.u32 %v895, %v448
      %908 = vmatpush.bf16.msra.mxu0 0
      %909 = vmatpush.bf16.msra.mxu0 0
      %910 = vmatpush.bf16.msra.mxu0 0
      %911 = vmatpush.bf16.msra.mxu0 0
      %912 = vmatpush.bf16.msra.mxu0 0
      %913 = vmatpush.bf16.msra.mxu0 0
      %914 = vmatpush.bf16.msra.mxu0 0
      %915 = vmatpush.bf16.msra.mxu0 %v900
      %916 = vmatmul.bf16.gmra.mxu0 %v897
      %v917 = vpop.f32.mrf.mxu0
      %v918 = vadd.f32 0.0, %v917
      %v919 = vpop.f32.mrf.mxu0
      %v920 = vadd.f32 0.0, %v919
      %921 = vdwg.mxu0
      %922 = vmatpush.bf16.msra.mxu0 0
      %923 = vmatpush.bf16.msra.mxu0 0
      %924 = vmatpush.bf16.msra.mxu0 0
      %925 = vmatpush.bf16.msra.mxu0 0
      %926 = vmatpush.bf16.msra.mxu0 0
      %927 = vmatpush.bf16.msra.mxu0 0
      %928 = vmatpush.bf16.msra.mxu0 0
      %929 = vmatpush.bf16.msra.mxu0 %v903
      %930 = vmatmul.bf16.gmra.mxu0 %v897
      %v931 = vpop.f32.mrf.mxu0
      %v932 = vadd.f32 0.0, %v931
      %v933 = vpop.f32.mrf.mxu0
      %v934 = vadd.f32 0.0, %v933
      %935 = vdwg.mxu0
      %936 = vmatpush.bf16.msra.mxu0 0
      %937 = vmatpush.bf16.msra.mxu0 0
      %938 = vmatpush.bf16.msra.mxu0 0
      %939 = vmatpush.bf16.msra.mxu0 0
      %940 = vmatpush.bf16.msra.mxu0 0
      %941 = vmatpush.bf16.msra.mxu0 0
      %942 = vmatpush.bf16.msra.mxu0 0
      %943 = vmatpush.bf16.msra.mxu0 %v906
      %944 = vmatmul.bf16.gmra.mxu0 %v897
      %v945 = vpop.f32.mrf.mxu0
      %v946 = vadd.f32 0.0, %v945
      %v947 = vpop.f32.mrf.mxu0
      %v948 = vadd.f32 0.0, %v947
      %949 = vdwg.mxu0
      %v950 = vadd.f32 %v870, %v918
      %v951 = vadd.f32 %v871, %v932
      %v952 = vadd.f32 %v872, %v946
      %v953 = vadd.f32 %v873, %v920
      %v954 = vadd.f32 %v874, %v934
      %v955 = vadd.f32 %v875, %v948
      %s956 = scalar_lea.vmem %s2, 56
      %v957 = vld [vmem:[%s956] sm:$0xf]
      %v958 = vld [vmem:[%s956 + $0x4] sm:$0x1]
      %v961 = vunpack.c.l.b16 %v957
      %v962 = vunpack.c.l.b16 %v958
      %v963 = vpack.c.b16 %v962, %v961
      %964 = vrot.lane.b32.xlu0 %v412, 91
      %v965 = vpop.permute.xlu0 %964
      %966 = vrot.lane.b32.xlu0 %v414, 91
      %v967 = vpop.permute.xlu0 %966
      %968 = vrot.lane.b32.xlu0 %v416, 91
      %v969 = vpop.permute.xlu0 %968
      %970 = vrot.lane.b32.xlu0 %v409, 91
      %v971 = vpop.permute.xlu0 %970
      %vm972 = vcmask 744448
      %v973 = vsel %vm972, %v965, %v967
      %v974 = vsel %vm972, %v967, %v969
      %v975 = vsel %vm972, %v969, %v971
      %v977 = vsel %vm441, %v963, 0
      %v980 = vand.u32 %v973, %v448
      %v983 = vand.u32 %v974, %v448
      %v986 = vand.u32 %v975, %v448
      %988 = vmatpush.bf16.msra.mxu0 0
      %989 = vmatpush.bf16.msra.mxu0 0
      %990 = vmatpush.bf16.msra.mxu0 0
      %991 = vmatpush.bf16.msra.mxu0 0
      %992 = vmatpush.bf16.msra.mxu0 0
      %993 = vmatpush.bf16.msra.mxu0 0
      %994 = vmatpush.bf16.msra.mxu0 0
      %995 = vmatpush.bf16.msra.mxu0 %v980
      %996 = vmatmul.bf16.gmra.mxu0 %v977
      %v997 = vpop.f32.mrf.mxu0
      %v998 = vadd.f32 0.0, %v997
      %v999 = vpop.f32.mrf.mxu0
      %v1000 = vadd.f32 0.0, %v999
      %1001 = vdwg.mxu0
      %1002 = vmatpush.bf16.msra.mxu0 0
      %1003 = vmatpush.bf16.msra.mxu0 0
      %1004 = vmatpush.bf16.msra.mxu0 0
      %1005 = vmatpush.bf16.msra.mxu0 0
      %1006 = vmatpush.bf16.msra.mxu0 0
      %1007 = vmatpush.bf16.msra.mxu0 0
      %1008 = vmatpush.bf16.msra.mxu0 0
      %1009 = vmatpush.bf16.msra.mxu0 %v983
      %1010 = vmatmul.bf16.gmra.mxu0 %v977
      %v1011 = vpop.f32.mrf.mxu0
      %v1012 = vadd.f32 0.0, %v1011
      %v1013 = vpop.f32.mrf.mxu0
      %v1014 = vadd.f32 0.0, %v1013
      %1015 = vdwg.mxu0
      %1016 = vmatpush.bf16.msra.mxu0 0
      %1017 = vmatpush.bf16.msra.mxu0 0
      %1018 = vmatpush.bf16.msra.mxu0 0
      %1019 = vmatpush.bf16.msra.mxu0 0
      %1020 = vmatpush.bf16.msra.mxu0 0
      %1021 = vmatpush.bf16.msra.mxu0 0
      %1022 = vmatpush.bf16.msra.mxu0 0
      %1023 = vmatpush.bf16.msra.mxu0 %v986
      %1024 = vmatmul.bf16.gmra.mxu0 %v977
      %v1025 = vpop.f32.mrf.mxu0
      %v1026 = vadd.f32 0.0, %v1025
      %v1027 = vpop.f32.mrf.mxu0
      %v1028 = vadd.f32 0.0, %v1027
      %1029 = vdwg.mxu0
      %v1030 = vadd.f32 %v950, %v998
      %v1031 = vadd.f32 %v951, %v1012
      %v1032 = vadd.f32 %v952, %v1026
      %v1033 = vadd.f32 %v953, %v1000
      %v1034 = vadd.f32 %v954, %v1014
      %v1035 = vadd.f32 %v955, %v1028
      %s1036 = scalar_lea.vmem %s2, 64
      %v1037 = vld [vmem:[%s1036] sm:$0xf]
      %v1038 = vld [vmem:[%s1036 + $0x4] sm:$0x1]
      %v1041 = vunpack.c.l.b16 %v1037
      %v1042 = vunpack.c.l.b16 %v1038
      %v1043 = vpack.c.b16 %v1042, %v1041
      %1044 = vrot.lane.b32.xlu0 %v412, 90
      %v1045 = vpop.permute.xlu0 %1044
      %1046 = vrot.lane.b32.xlu0 %v414, 90
      %v1047 = vpop.permute.xlu0 %1046
      %1048 = vrot.lane.b32.xlu0 %v416, 90
      %v1049 = vpop.permute.xlu0 %1048
      %1050 = vrot.lane.b32.xlu0 %v409, 90
      %v1051 = vpop.permute.xlu0 %1050
      %vm1052 = vcmask 736256
      %v1053 = vsel %vm1052, %v1045, %v1047
      %v1054 = vsel %vm1052, %v1047, %v1049
      %v1055 = vsel %vm1052, %v1049, %v1051
      %v1057 = vsel %vm441, %v1043, 0
      %v1060 = vand.u32 %v1053, %v448
      %v1063 = vand.u32 %v1054, %v448
      %v1066 = vand.u32 %v1055, %v448
      %1068 = vmatpush.bf16.msra.mxu0 0
      %1069 = vmatpush.bf16.msra.mxu0 0
      %1070 = vmatpush.bf16.msra.mxu0 0
      %1071 = vmatpush.bf16.msra.mxu0 0
      %1072 = vmatpush.bf16.msra.mxu0 0
      %1073 = vmatpush.bf16.msra.mxu0 0
      %1074 = vmatpush.bf16.msra.mxu0 0
      %1075 = vmatpush.bf16.msra.mxu0 %v1060
      %1076 = vmatmul.bf16.gmra.mxu0 %v1057
      %v1077 = vpop.f32.mrf.mxu0
      %v1078 = vadd.f32 0.0, %v1077
      %v1079 = vpop.f32.mrf.mxu0
      %v1080 = vadd.f32 0.0, %v1079
      %1081 = vdwg.mxu0
      %1082 = vmatpush.bf16.msra.mxu0 0
      %1083 = vmatpush.bf16.msra.mxu0 0
      %1084 = vmatpush.bf16.msra.mxu0 0
      %1085 = vmatpush.bf16.msra.mxu0 0
      %1086 = vmatpush.bf16.msra.mxu0 0
      %1087 = vmatpush.bf16.msra.mxu0 0
      %1088 = vmatpush.bf16.msra.mxu0 0
      %1089 = vmatpush.bf16.msra.mxu0 %v1063
      %1090 = vmatmul.bf16.gmra.mxu0 %v1057
      %v1091 = vpop.f32.mrf.mxu0
      %v1092 = vadd.f32 0.0, %v1091
      %v1093 = vpop.f32.mrf.mxu0
      %v1094 = vadd.f32 0.0, %v1093
      %1095 = vdwg.mxu0
      %1096 = vmatpush.bf16.msra.mxu0 0
      %1097 = vmatpush.bf16.msra.mxu0 0
      %1098 = vmatpush.bf16.msra.mxu0 0
      %1099 = vmatpush.bf16.msra.mxu0 0
      %1100 = vmatpush.bf16.msra.mxu0 0
      %1101 = vmatpush.bf16.msra.mxu0 0
      %1102 = vmatpush.bf16.msra.mxu0 0
      %1103 = vmatpush.bf16.msra.mxu0 %v1066
      %1104 = vmatmul.bf16.gmra.mxu0 %v1057
      %v1105 = vpop.f32.mrf.mxu0
      %v1106 = vadd.f32 0.0, %v1105
      %v1107 = vpop.f32.mrf.mxu0
      %v1108 = vadd.f32 0.0, %v1107
      %1109 = vdwg.mxu0
      %v1110 = vadd.f32 %v1030, %v1078
      %v1111 = vadd.f32 %v1031, %v1092
      %v1112 = vadd.f32 %v1032, %v1106
      %v1113 = vadd.f32 %v1033, %v1080
      %v1114 = vadd.f32 %v1034, %v1094
      %v1115 = vadd.f32 %v1035, %v1108
      %v1116 = vld [vmem:[%s3] sm:$0xff]
      %v1117 = vld [vmem:[%s3 + $0x8] sm:$0x3]
      %1119 = vset.pattern.permute.xlu0 0
      %1120 = vperm.xlu0 %1119, %v1116
      %v1121 = vpop.permute.xlu0 %1120
      %1124 = vset.pattern.permute.xlu0 0
      %1125 = vperm.xlu0 %1124, %v1117
      %v1126 = vpop.permute.xlu0 %1125
      %v1128 = vadd.f32 %v1110, %v1121
      %v1129 = vadd.f32 %v1111, %v1121
      %v1130 = vadd.f32 %v1112, %v1121
      %v1131 = vadd.f32 %v1113, %v1126
      %v1132 = vadd.f32 %v1114, %v1126
      %v1133 = vadd.f32 %v1115, %v1126
      %v1134 = vmax.f32 %v1128, 0.0
      %v1135 = vmax.f32 %v1129, 0.0
      %v1136 = vmax.f32 %v1130, 0.0
      %v1137 = vmax.f32 %v1131, 0.0
      %v1138 = vmax.f32 %v1132, 0.0
      %v1139 = vmax.f32 %v1133, 0.0
      %v1140 = vpack.c.bf16 %v1137, %v1134
      %v1141 = vpack.c.bf16 %v1138, %v1135
      %v1142 = vpack.c.bf16 %v1139, %v1136
      %v1143 = vld [vmem:[%s4] sm:$0xf]
      %v1144 = vld [vmem:[%s4 + $0x4] sm:$0xf]
      %v1145 = vld [vmem:[%s4 + $0x8] sm:$0x3]
      %v1146 = vld [vmem:[%s5] sm:$0xff]
      %v1147 = vld [vmem:[%s5 + $0x8] sm:$0xff]
      %v1148 = vld [vmem:[%s5 + $0x10] sm:$0xf]
      %1150 = vset.pattern.permute.xlu0 0
      %1151 = vperm.xlu0 %1150, %v1146
      %v1152 = vpop.permute.xlu0 %1151
      %1155 = vset.pattern.permute.xlu0 0
      %1156 = vperm.xlu0 %1155, %v1147
      %v1157 = vpop.permute.xlu0 %1156
      %1160 = vset.pattern.permute.xlu0 0
      %1161 = vperm.xlu0 %1160, %v1148
      %v1162 = vpop.permute.xlu0 %1161
      %v1167 = vunpack.c.l.b16 %v1143
      %v1168 = vunpack.c.l.b16 %v1144
      %v1169 = vunpack.c.l.b16 %v1145
      %v1170 = vpack.c.b16 %v1168, %v1167
      %v1171 = vpack.c.b16 %v1169, %v1169
      %vm1172 = vcmask 80896
      %v1174 = vsel %vm1172, %v1170, 0
      %v1177 = vsel %vm1172, %v1171, 0
      %vm1179 = vcmask 1044480
      %v1181 = vsel %vm1179, %v1140, 0
      %v1184 = vsel %vm1179, %v1141, 0
      %v1187 = vsel %vm1179, %v1142, 0
      %1189 = vmatpush.bf16.msra.mxu0 0
      %1190 = vmatpush.bf16.msra.mxu0 0
      %1191 = vmatpush.bf16.msra.mxu0 0
      %1192 = vmatpush.bf16.msra.mxu0 0
      %1193 = vmatpush.bf16.msra.mxu0 0
      %1194 = vmatpush.bf16.msra.mxu0 0
      %1195 = vmatpush.bf16.msra.mxu0 0
      %1196 = vmatpush.bf16.msra.mxu0 %v1181
      %1197 = vmatmul.bf16.gmra.mxu0 %v1174
      %v1198 = vpop.f32.mrf.mxu0
      %v1199 = vadd.f32 %v1152, %v1198
      %v1200 = vpop.f32.mrf.mxu0
      %v1201 = vadd.f32 %v1157, %v1200
      %1202 = vmatmul.bf16.gmra.mxu0 %v1177
      %v1203 = vpop.f32.mrf.mxu0
      %v1204 = vadd.f32 %v1162, %v1203
      %v1205 = vpop.f32.mrf.mxu0
      %1206 = vdwg.mxu0
      %1207 = vmatpush.bf16.msra.mxu0 0
      %1208 = vmatpush.bf16.msra.mxu0 0
      %1209 = vmatpush.bf16.msra.mxu0 0
      %1210 = vmatpush.bf16.msra.mxu0 0
      %1211 = vmatpush.bf16.msra.mxu0 0
      %1212 = vmatpush.bf16.msra.mxu0 0
      %1213 = vmatpush.bf16.msra.mxu0 0
      %1214 = vmatpush.bf16.msra.mxu0 %v1184
      %1215 = vmatmul.bf16.gmra.mxu0 %v1174
      %v1216 = vpop.f32.mrf.mxu0
      %v1217 = vadd.f32 %v1152, %v1216
      %v1218 = vpop.f32.mrf.mxu0
      %v1219 = vadd.f32 %v1157, %v1218
      %1220 = vmatmul.bf16.gmra.mxu0 %v1177
      %v1221 = vpop.f32.mrf.mxu0
      %v1222 = vadd.f32 %v1162, %v1221
      %v1223 = vpop.f32.mrf.mxu0
      %1224 = vdwg.mxu0
      %1225 = vmatpush.bf16.msra.mxu0 0
      %1226 = vmatpush.bf16.msra.mxu0 0
      %1227 = vmatpush.bf16.msra.mxu0 0
      %1228 = vmatpush.bf16.msra.mxu0 0
      %1229 = vmatpush.bf16.msra.mxu0 0
      %1230 = vmatpush.bf16.msra.mxu0 0
      %1231 = vmatpush.bf16.msra.mxu0 0
      %1232 = vmatpush.bf16.msra.mxu0 %v1187
      %1233 = vmatmul.bf16.gmra.mxu0 %v1174
      %v1234 = vpop.f32.mrf.mxu0
      %v1235 = vadd.f32 %v1152, %v1234
      %v1236 = vpop.f32.mrf.mxu0
      %v1237 = vadd.f32 %v1157, %v1236
      %1238 = vmatmul.bf16.gmra.mxu0 %v1177
      %v1239 = vpop.f32.mrf.mxu0
      %v1240 = vadd.f32 %v1162, %v1239
      %v1241 = vpop.f32.mrf.mxu0
      %1242 = vdwg.mxu0
      %v1243 = vpack.c.bf16 %v1217, %v1199
      %v1244 = vpack.c.bf16 %v1235, %v1235
      %v1245 = vpack.c.bf16 %v1219, %v1201
      %v1246 = vpack.c.bf16 %v1237, %v1237
      %1247 = vst [vmem:[%s395] sm:$0xff] %v1243
      %1248 = vst [vmem:[%s395 + $0x8] sm:$0xf] %v1244
      %1249 = vst [vmem:[%s395 + $0xc] sm:$0xff] %v1245
      %1250 = vst [vmem:[%s395 + $0x14] sm:$0xf] %v1246
      %v1251 = vpack.c.bf16 %v1222, %v1204
      %v1252 = vpack.c.bf16 %v1240, %v1240
      %v1255 = vrot.slane %v1251, 2
      %v1256 = vrot.slane %v1252, 4
      %v1257 = vrot.slane %v1252, 6
      %v1260 = vsel %vm446, %v1251, %v1255
      %vm1261 = vcmask 1045508
      %v1264 = vsel %vm1261, %v1256, %v1257
      %vm1265 = vcmask 1043456
      %v1266 = vsel %vm1265, %v1260, %v1264
      %1268 = vst [vmem:[%s405] sm:$0x3f] %v1266
      %s1269 = smul.u32 3, %s24
      %p1270 = scmp.lt.s32.totalorder %s23, 1
      %s1271 = scalar_select %p1270, %s23, 1
      %p1272 = scmp.lt.s32.totalorder %s1269, 2
      %s1273 = scalar_select %p1272, %s1269, 2
      %s1274 = smul.addr %s1271, 6
      %s1275 = sadd.s32 %s1273, %s1274
      %s1276 = smul.addr %s1275, 4
      %s1277 = scalar_lea.vmem %s6, %s1276
      %s1278 = smul.u32 3, %s24
      %p1279 = scmp.lt.s32.totalorder %s23, 1
      %s1280 = scalar_select %p1279, %s23, 1
      %p1281 = scmp.lt.s32.totalorder %s1278, 2
      %s1282 = scalar_select %p1281, %s1278, 2
      %s1283 = smul.addr %s1280, 3
      %s1284 = sadd.s32 %s1282, %s1283
      %s1285 = smul.addr %s1284, 2
      %s1286 = scalar_lea.vmem %s7, %s1285
      // Predicated region
      $region45: #{bevnet_forward.1} parent=43 // pred_check
        %p1287 = pneg %p195
      $region46: #{bevnet_forward.1} parent=43 // pred_check_branch
        %1289 = sbr.rel (%p1287) target = $region48
      $region47: #{bevnet_forward.1} parent=43 // pred_region
        %s1290 = smul.u32 3, %s24
      $region48: #{bevnet_forward.1} parent=43 // pred_fallthru
        _
      // Predicated region
      $region49: #{bevnet_forward.1} parent=43 // pred_check
        %p1291 = pneg %p223
      $region50: #{bevnet_forward.1} parent=43 // pred_check_branch
        %1293 = sbr.rel (%p1291) target = $region52
      $region51: #{bevnet_forward.1} parent=43 // pred_region
        %s1294 = smul.u32 3, %s24
      $region52: #{bevnet_forward.1} parent=43 // pred_fallthru
        _
    $region44: #{bevnet_forward.1} parent=5 // pred_fallthru
      _
    %p1295 = scmp.le.s32.totalorder 2, %s14
    // Predicated region
    $region53: #{bevnet_forward.1} parent=5 // pred_check
      %p1296 = pneg %p1295
    $region54: #{bevnet_forward.1} parent=5 // pred_check_branch
      %1298 = sbr.rel (%p1296) target = $region56
    $region55: #{bevnet_forward.1} parent=5 // pred_region
      %s1299 = ssub.s32 %s14, 2
      // Predicated region
      $region57: #{bevnet_forward.1} parent=55 // pred_check
        %p1300 = pneg %p201
      $region58: #{bevnet_forward.1} parent=55 // pred_check_branch
        %1302 = sbr.rel (%p1300) target = $region60
      $region59: #{bevnet_forward.1} parent=55 // pred_region
        %s1303 = smul.u32 3, %s26
        %p1304 = scmp.lt.s32.totalorder %s25, 1
        %s1305 = scalar_select %p1304, %s25, 1
        %p1306 = scmp.lt.s32.totalorder %s1303, 2
        %s1307 = scalar_select %p1306, %s1303, 2
        %s1308 = smul.addr %s1305, 6
        %s1309 = sadd.s32 %s1307, %s1308
        %s1310 = smul.addr %s1309, 4
        %s1311 = scalar_lea.vmem %s6, %s1310
      $region60: #{bevnet_forward.1} parent=55 // pred_fallthru
        _
      // Predicated region
      $region61: #{bevnet_forward.1} parent=55 // pred_check
        %p1312 = pneg %p229
      $region62: #{bevnet_forward.1} parent=55 // pred_check_branch
        %1314 = sbr.rel (%p1312) target = $region64
      $region63: #{bevnet_forward.1} parent=55 // pred_region
        %s1315 = smul.u32 3, %s26
        %p1316 = scmp.lt.s32.totalorder %s25, 1
        %s1317 = scalar_select %p1316, %s25, 1
        %p1318 = scmp.lt.s32.totalorder %s1315, 2
        %s1319 = scalar_select %p1318, %s1315, 2
        %s1320 = smul.addr %s1317, 3
        %s1321 = sadd.s32 %s1319, %s1320
        %s1322 = smul.addr %s1321, 2
        %s1323 = scalar_lea.vmem %s7, %s1322
      $region64: #{bevnet_forward.1} parent=55 // pred_fallthru
        _
    $region56: #{bevnet_forward.1} parent=5 // pred_fallthru
      _
  $region6: #{bevnet_forward.1} parent=0 // loop_footer
    %s18 = sadd.s32 1, %s14
  $region7: #{bevnet_forward.1} parent=0 // loop_footer_branch
    %13 = sbr.rel target = $region3
  $region8: #{bevnet_forward.1} parent=0 // loop_exit
    _

</llo_original>
